<compile_context>
chip_gen: v5e
topology: v5e:2x2
jax: 0.10.0
libtpu: 0.0.40
codegen_flags: <defaults>
</compile_context>

<pallas_src>
import functools
import math

import jax
import jax.numpy as jnp
from jax import lax
from jax.experimental import pallas as pl
from jax.experimental.pallas import tpu as pltpu

# ----------------------------- model config ---------------------------------
VOXEL_SIZE = (0.2, 0.2, 4.0)
PC_RANGE = (0.0, -40.0, -3.0, 70.4, 40.0, 1.0)
IN_CHANNELS = 4              # (x, y, z, r)
FEAT_CHANNELS = 64           # feat_channels=(64,) -> single PFN layer, last, mode='max'
AUG_CHANNELS = IN_CHANNELS + 3 + 3   # + cluster offset + voxel-center offset
BN_EPS = 1e-3
# TODO(synk): with_distance=True branch (extra Euclidean-norm channel) not implemented
#             (module default is with_distance=False).


# --------------------------- fused PFN kernel --------------------------------
def _pfn_fused_kernel(feat_ref, side_ref, wp_ref, wv_ref, shift_ref, out_ref,
                      *, tn, m2, mc2, n_chunks, cout):
    """One tile of `tn` pillars.  feat_ref is (tn, m2, 8): two points per row."""
    two_c = 2 * cout

    sides = side_ref[...]                         # (tn, 8): [npts, cx, cy, cz, 0...]
    cnt = sides[:, 0:1]                           # (tn, 1) f32
    center = sides[:, 1:4]                        # (tn, 3)

    # Cluster mean: sum over ALL rows (hard voxelizer zero-pads invalid rows,
    # exactly like the reference) / num_points, clamped so empty/padded pillars
    # stay finite instead of NaN.
    feats = feat_ref[...]                         # (tn, m2, 8)
    s8 = jnp.sum(feats, axis=1)                   # (tn, 8)
    sum_xyz = s8[:, 0:3] + s8[:, 4:7]             # (tn, 3)
    mean = sum_xyz / jnp.maximum(cnt, 1.0)        # (tn, 3)

    # Per-pillar part of the folded, bias-free linear layer, duplicated across
    # both 64-lane halves:  vox_lin = mean @ Wcluster' + center @ Wcenter'.
    vox_in = jnp.concatenate([mean, center], axis=1)                    # (tn, 6)
    vox_lin = jnp.dot(vox_in, wv_ref[...],
                      preferred_element_type=jnp.float32)               # (tn, 2*cout)

    # Point-id grid for the validity mask: lane < cout -> even point of the pair,
    # lane >= cout -> odd point; chunk offset is added inside the loop.
    lane = lax.broadcasted_iota(jnp.int32, (tn, mc2, two_c), 2)
    row = lax.broadcasted_iota(jnp.int32, (tn, mc2, two_c), 1)
    pid_base = 2 * row + (lane >= cout).astype(jnp.int32)
    cnt_i = cnt.astype(jnp.int32)[:, :, None]                           # (tn, 1, 1)

    wp = wp_ref[...]                                                    # (8, 2*cout)

    def body(c, carry):
        acc_max, acc_min = carry
        start = c * mc2
        if mc2 % 8 == 0:
            start = pl.multiple_of(start, 8)
        chunk = feat_ref[:, pl.ds(start, mc2), :]                       # (tn, mc2, 8)
        # ONE packed matmul: two points per row vs the block-diagonal weight.
        pt = jnp.dot(chunk.reshape(tn * mc2, 2 * IN_CHANNELS), wp,
                     preferred_element_type=jnp.float32)
        lin = pt.reshape(tn, mc2, two_c) - vox_lin[:, None, :]
        # Mask invalid points (reference masks the augmented features before the
        # bias-free linear layer, so zeroing `lin` is identical).
        valid = (pid_base + 2 * c * mc2) < cnt_i
        lin = jnp.where(valid, lin, 0.0)
        acc_max = jnp.maximum(acc_max, jnp.max(lin, axis=1))
        acc_min = jnp.minimum(acc_min, jnp.min(lin, axis=1))
        return acc_max, acc_min

    init = (jnp.full((tn, two_c), -jnp.inf, jnp.float32),
            jnp.full((tn, two_c), jnp.inf, jnp.float32))
    acc_max, acc_min = lax.fori_loop(0, n_chunks, body, init)

    # Combine the even/odd-point 64-lane halves (XLU roll, shift==half the width).
    rmax = jnp.maximum(acc_max, pltpu.roll(acc_max, shift=cout, axis=1))[:, 0:cout]
    rmin = jnp.minimum(acc_min, pltpu.roll(acc_min, shift=cout, axis=1))[:, 0:cout]

    # GELU hoisted past the max via unimodality; erf evaluated on 2 x (tn, cout) only.
    shift = shift_ref[...]                                              # (1, cout)
    inv_sqrt2 = 1.0 / math.sqrt(2.0)
    y_hi = rmax + shift
    y_lo = rmin + shift
    g_hi = 0.5 * y_hi * (1.0 + lax.erf(y_hi * inv_sqrt2))
    g_lo = 0.5 * y_lo * (1.0 + lax.erf(y_lo * inv_sqrt2))
    out_ref[...] = jnp.maximum(g_hi, g_lo)                              # (tn, cout)


# ------------------------------ wrapper --------------------------------------
def pillar_feature_net_forward(features, num_points, coors, w, bn_scale, bn_shift,
                               *, voxel_size=VOXEL_SIZE, pc_range=PC_RANGE,
                               tile_n=None):
    """features (N,M,4) f32, num_points (N,) int, coors (N,3+) int,
    w (10,64) Linear weight (in,out layout), bn_scale/bn_shift (64,) eval-mode
    BatchNorm folded to per-channel affine.  Returns (N, 64) pillar features."""
    n, m, c = features.shape
    assert c == IN_CHANNELS
    cout = w.shape[1]
    vx, vy, vz = voxel_size
    x_off = vx / 2 + pc_range[0]
    y_off = vy / 2 + pc_range[1]
    z_off = vz / 2 + pc_range[2]

    # ---- one-time parameter folding (outside the kernel) --------------------
    w_f = (w * bn_scale[None, :]).astype(jnp.float32)       # BN scale -> weight cols
    w_feat = w_f[0:IN_CHANNELS]
    w_cl = w_f[IN_CHANNELS:IN_CHANNELS + 3]
    w_ce = w_f[IN_CHANNELS + 3:IN_CHANNELS + 6]
    wp4 = w_feat.at[0:3].add(w_cl + w_ce)                   # xyz feeds all 3 branches
    # Two points per matmul row -> block-diagonal (8, 2*cout) weight.
    wp2 = jnp.zeros((2 * IN_CHANNELS, 2 * cout), jnp.float32)
    wp2 = wp2.at[0:IN_CHANNELS, 0:cout].set(wp4)
    wp2 = wp2.at[IN_CHANNELS:, cout:].set(wp4)
    wv = jnp.concatenate([w_cl, w_ce], axis=0)               # (6, cout), subtracted
    wv2 = jnp.concatenate([wv, wv], axis=1)                  # (6, 2*cout)
    shift = bn_shift.reshape(1, cout).astype(jnp.float32)

    # ---- input prep (contiguous reshapes only; no K padding in HBM) ---------
    feats = features.astype(jnp.float32)
    if m % 2 != 0:                             # make point count even for pairing
        feats = jnp.pad(feats, ((0, 0), (0, 1), (0, 0)))
    m2 = feats.shape[1] // 2
    feats_packed = feats.reshape(n, m2, 2 * IN_CHANNELS)     # two points per row

    coors_f = coors.astype(jnp.float32)
    center = jnp.stack([coors_f[:, 2] * vx + x_off,           # module's pairing
                        coors_f[:, 1] * vy + y_off,
                        coors_f[:, 0] * vz + z_off], axis=1)  # (N, 3)
    sides = jnp.concatenate(
        [num_points.astype(jnp.float32).reshape(n, 1), center,
         jnp.zeros((n, 4), jnp.float32)], axis=1)             # (N, 8) one small block

    # ---- tiling: >=2 grid steps when possible, VMEM-safe on all gens --------
    if tile_n is None:
        tile_n = min(512, max(8, -(-((n + 1) // 2) // 8) * 8))
    assert tile_n % 8 == 0
    n_pad = -(-n // tile_n) * tile_n
    if n_pad != n:                              # padded pillars: npts=0 -> masked
        feats_packed = jnp.pad(feats_packed, ((0, n_pad - n), (0, 0), (0, 0)))
        sides = jnp.pad(sides, ((0, n_pad - n), (0, 0)))

    mc2 = 8 if m2 % 8 == 0 else m2              # chunk point-pair rows in 8s
    n_chunks = m2 // mc2

    kernel = functools.partial(_pfn_fused_kernel, tn=tile_n, m2=m2, mc2=mc2,
                               n_chunks=n_chunks, cout=cout)
    out = pl.pallas_call(
        kernel,
        out_shape=jax.ShapeDtypeStruct((n_pad, cout), jnp.float32),
        grid=(n_pad // tile_n,),
        in_specs=[
            pl.BlockSpec((tile_n, m2, 2 * IN_CHANNELS), lambda i: (i, 0, 0)),  # points
            pl.BlockSpec((tile_n, 8), lambda i: (i, 0)),                       # npts+center
            pl.BlockSpec((2 * IN_CHANNELS, 2 * cout), lambda i: (0, 0)),       # packed W
            pl.BlockSpec((6, 2 * cout), lambda i: (0, 0)),                     # per-pillar W
            pl.BlockSpec((1, cout), lambda i: (0, 0)),                         # BN shift
        ],
        out_specs=pl.BlockSpec((tile_n, cout), lambda i: (i, 0)),
        compiler_params=pltpu.CompilerParams(
            dimension_semantics=("parallel",),
            vmem_limit_bytes=48 * 1024 * 1024),
    )(feats_packed, sides, wp2, wv2, shift)
    return out[:n]


# ------------------- pure-JAX reference (for a sanity check) -----------------
def _reference_forward(features, num_points, coors, w, bn_scale, bn_shift):
    """Direct jnp transcription of PillarFeatureNet.forward (eval-mode BN)."""
    vx, vy, vz = VOXEL_SIZE
    x_off = vx / 2 + PC_RANGE[0]
    y_off = vy / 2 + PC_RANGE[1]
    z_off = vz / 2 + PC_RANGE[2]
    n, m, _ = features.shape
    npts = num_points.astype(jnp.float32).reshape(-1, 1, 1)
    points_mean = jnp.sum(features[:, :, :3], axis=1, keepdims=True) / npts
    f_cluster = features[:, :, :3] - points_mean
    coors_f = coors.astype(jnp.float32)
    f_center = jnp.stack([
        features[:, :, 0] - (coors_f[:, 2][:, None] * vx + x_off),
        features[:, :, 1] - (coors_f[:, 1][:, None] * vy + y_off),
        features[:, :, 2] - (coors_f[:, 0][:, None] * vz + z_off)], axis=-1)
    aug = jnp.concatenate([features, f_cluster, f_center], axis=-1)
    mask = (jnp.arange(m)[None, :] < num_points[:, None]).astype(jnp.float32)
    aug = aug * mask[:, :, None]
    x = aug @ w                                                  # Linear(bias=False)
    x = x * bn_scale[None, None, :] + bn_shift[None, None, :]    # BatchNorm1d (eval)
    x = jax.nn.gelu(x, approximate=False)                        # F.gelu (exact)
    return jnp.max(x, axis=1)                                    # mode='max' + squeeze


# ----------------------------------- main ------------------------------------
if __name__ == "__main__":
    key = jax.random.PRNGKey(0)
    k_feat, k_np, k_cy, k_cx, k_w, kg, kb, km, kv = jax.random.split(key, 9)

    N, M = 32, 16                     # pillars, max points per pillar (small demo)
    num_points = jax.random.randint(k_np, (N,), 1, M + 1)

    # raw points inside the point-cloud range, reflectance in [0, 1]
    pts = jax.random.uniform(k_feat, (N, M, IN_CHANNELS), jnp.float32)
    lo = jnp.array([PC_RANGE[0], PC_RANGE[1], PC_RANGE[2], 0.0], jnp.float32)
    hi = jnp.array([PC_RANGE[3], PC_RANGE[4], PC_RANGE[5], 1.0], jnp.float32)
    pts = lo + pts * (hi - lo)
    # zero padded rows, as the hard voxelizer does
    valid = jnp.arange(M)[None, :] < num_points[:, None]
    features = jnp.where(valid[:, :, None], pts, 0.0)

    # coors rows are (z_idx, y_idx, x_idx) so coors[:,2]<->vx, coors[:,1]<->vy,
    # coors[:,0]<->vz exactly as the module indexes them.
    z_idx = jnp.zeros((N,), jnp.int32)
    y_idx = jax.random.randint(k_cy, (N,), 0, 400)
    x_idx = jax.random.randint(k_cx, (N,), 0, 352)
    coors = jnp.stack([z_idx, y_idx, x_idx], axis=1)

    # deterministic synthetic parameters (Linear weight in (in, out) layout)
    bound = AUG_CHANNELS ** -0.5
    w = jax.random.uniform(k_w, (AUG_CHANNELS, FEAT_CHANNELS), jnp.float32,
                           -bound, bound)
    gamma = 1.0 + 0.1 * jax.random.normal(kg, (FEAT_CHANNELS,), jnp.float32)
    beta = 0.1 * jax.random.normal(kb, (FEAT_CHANNELS,), jnp.float32)
    run_mean = 0.1 * jax.random.normal(km, (FEAT_CHANNELS,), jnp.float32)
    run_var = 1.0 + 0.1 * jax.random.uniform(kv, (FEAT_CHANNELS,), jnp.float32)
    bn_scale = gamma / jnp.sqrt(run_var + BN_EPS)
    bn_shift = beta - run_mean * bn_scale

    out = pillar_feature_net_forward(features, num_points, coors, w,
                                     bn_scale, bn_shift)
    jax.block_until_ready(out)

    ref = _reference_forward(features, num_points, coors, w, bn_scale, bn_shift)
    assert out.shape == (N, FEAT_CHANNELS)
    assert bool(jnp.all(jnp.isfinite(out)))
    assert bool(jnp.allclose(out, ref, atol=1e-3, rtol=1e-3))
    print("KERNEL_OK")
</pallas_src>

<mosaic_0001>
module attributes {stable_mosaic.version = 11 : i64} {
  func.func @_pfn_fused_kernel(%arg0: i32, %arg1: memref<16x8x8xf32, #tpu.memory_space<vmem>>, %arg2: memref<16x8xf32, #tpu.memory_space<vmem>>, %arg3: memref<8x128xf32, #tpu.memory_space<vmem>>, %arg4: memref<6x128xf32, #tpu.memory_space<vmem>>, %arg5: memref<1x64xf32, #tpu.memory_space<vmem>>, %arg6: memref<16x64xf32, #tpu.memory_space<vmem>>) attributes {dimension_semantics = [#tpu.dimension_semantics<parallel>], iteration_bounds = array<i64: 2>, scalar_prefetch = 0 : i64, scratch_operands = 0 : i64, tpu.core_type = #tpu.core_type<tc>, window_params = [{transform_indices = @transform_0, window_bounds = array<i64: 16, 8, 8>}, {transform_indices = @transform_1, window_bounds = array<i64: 16, 8>}, {pipeline_mode = #tpu.pipeline_mode<synchronous>, transform_indices = @transform_2, window_bounds = array<i64: 8, 128>}, {pipeline_mode = #tpu.pipeline_mode<synchronous>, transform_indices = @transform_3, window_bounds = array<i64: 6, 128>}, {pipeline_mode = #tpu.pipeline_mode<synchronous>, transform_indices = @transform_4, window_bounds = array<i64: 1, 64>}, {transform_indices = @transform_5, window_bounds = array<i64: 16, 64>}]} {
    %c0 = arith.constant 0 : index
    %c0_0 = arith.constant 0 : index
    %0 = vector.load %arg2[%c0, %c0_0] : memref<16x8xf32, #tpu.memory_space<vmem>>, vector<16x8xf32>
    %1 = vector.extract_strided_slice %0 {offsets = [0, 0], sizes = [16, 1], strides = [1, 1]} : vector<16x8xf32> to vector<16x1xf32>
    %2 = vector.extract_strided_slice %0 {offsets = [0, 1], sizes = [16, 3], strides = [1, 1]} : vector<16x8xf32> to vector<16x3xf32>
    %c0_1 = arith.constant 0 : index
    %c0_2 = arith.constant 0 : index
    %c0_3 = arith.constant 0 : index
    %3 = vector.load %arg1[%c0_1, %c0_2, %c0_3] : memref<16x8x8xf32, #tpu.memory_space<vmem>>, vector<16x8x8xf32>
    %cst = arith.constant dense<0.000000e+00> : vector<16x8xf32>
    %4 = vector.multi_reduction <add>, %3, %cst [1] : vector<16x8x8xf32> to vector<16x8xf32>
    %5 = vector.extract_strided_slice %4 {offsets = [0, 0], sizes = [16, 3], strides = [1, 1]} : vector<16x8xf32> to vector<16x3xf32>
    %6 = vector.extract_strided_slice %4 {offsets = [0, 4], sizes = [16, 3], strides = [1, 1]} : vector<16x8xf32> to vector<16x3xf32>
    %7 = arith.addf %5, %6 : vector<16x3xf32>
    %cst_4 = arith.constant 1.000000e+00 : f32
    %8 = vector.broadcast %cst_4 : f32 to vector<16x1xf32>
    %9 = arith.maximumf %1, %8 : vector<16x1xf32>
    %10 = vector.broadcast %9 : vector<16x1xf32> to vector<16x3xf32>
    %11 = arith.divf %7, %10 : vector<16x3xf32>
    %12 = tpu.concatenate %11, %2 in 1 : vector<16x3xf32>, vector<16x3xf32> -> vector<16x6xf32>
    %c0_5 = arith.constant 0 : index
    %c0_6 = arith.constant 0 : index
    %13 = vector.load %arg4[%c0_5, %c0_6] : memref<6x128xf32, #tpu.memory_space<vmem>>, vector<6x128xf32>
    %cst_7 = arith.constant dense<0.000000e+00> : vector<16x128xf32>
    %14 = tpu.matmul %12, %13, %cst_7 {dimension_numbers = #tpu.dot_dimension_numbers<[1], [0], [0], [1], [0, 0, 1, 1], [], []>} : vector<16x6xf32>, vector<6x128xf32>, vector<16x128xf32> -> vector<16x128xf32>
    %15 = tpu.iota {dimensions = array<i32: 2>} : vector<16x8x128xi32>
    %16 = tpu.iota {dimensions = array<i32: 1>} : vector<16x8x128xi32>
    %c2_i32 = arith.constant 2 : i32
    %17 = vector.broadcast %c2_i32 : i32 to vector<16x8x128xi32>
    %18 = arith.muli %17, %16 : vector<16x8x128xi32>
    %c64_i32 = arith.constant 64 : i32
    %19 = vector.broadcast %c64_i32 : i32 to vector<16x8x128xi32>
    %20 = arith.cmpi sge, %15, %19 : vector<16x8x128xi32>
    %21 = arith.extui %20 : vector<16x8x128xi1> to vector<16x8x128xi32>
    %22 = arith.addi %18, %21 : vector<16x8x128xi32>
    %23 = arith.fptosi %1 : vector<16x1xf32> to vector<16x1xi32>
    %24 = vector.shape_cast %23 : vector<16x1xi32> to vector<16x1x1xi32>
    %c0_8 = arith.constant 0 : index
    %c0_9 = arith.constant 0 : index
    %25 = vector.load %arg3[%c0_8, %c0_9] : memref<8x128xf32, #tpu.memory_space<vmem>>, vector<8x128xf32>
    %cst_10 = arith.constant 0xFF800000 : f32
    %26 = vector.broadcast %cst_10 : f32 to vector<16x128xf32>
    %cst_11 = arith.constant 0x7F800000 : f32
    %27 = vector.broadcast %cst_11 : f32 to vector<16x128xf32>
    %c0_i32 = arith.constant 0 : i32
    %c8_i32 = arith.constant 8 : i32
    %28 = arith.muli %c0_i32, %c8_i32 : i32
    %29 = tpu.assume_multiple %28, 8 : i32
    %c0_12 = arith.constant 0 : index
    %30 = arith.index_cast %29 : i32 to index
    %c0_13 = arith.constant 0 : index
    %31 = vector.load %arg1[%c0_12, %30, %c0_13] : memref<16x8x8xf32, #tpu.memory_space<vmem>>, vector<16x8x8xf32>
    %32 = vector.shape_cast %31 : vector<16x8x8xf32> to vector<128x8xf32>
    %cst_14 = arith.constant dense<0.000000e+00> : vector<128x128xf32>
    %33 = tpu.matmul %32, %25, %cst_14 {dimension_numbers = #tpu.dot_dimension_numbers<[1], [0], [0], [1], [0, 0, 1, 1], [], []>} : vector<128x8xf32>, vector<8x128xf32>, vector<128x128xf32> -> vector<128x128xf32>
    %34 = vector.shape_cast %33 : vector<128x128xf32> to vector<16x8x128xf32>
    %35 = vector.shape_cast %14 : vector<16x128xf32> to vector<16x1x128xf32>
    %36 = vector.broadcast %35 : vector<16x1x128xf32> to vector<16x8x128xf32>
    %37 = arith.subf %34, %36 : vector<16x8x128xf32>
    %c2_i32_15 = arith.constant 2 : i32
    %38 = arith.muli %c2_i32_15, %c0_i32 : i32
    %c8_i32_16 = arith.constant 8 : i32
    %39 = arith.muli %38, %c8_i32_16 : i32
    %40 = vector.broadcast %39 : i32 to vector<16x8x128xi32>
    %41 = arith.addi %22, %40 : vector<16x8x128xi32>
    %42 = vector.broadcast %24 : vector<16x1x1xi32> to vector<16x8x128xi32>
    %43 = arith.cmpi slt, %41, %42 : vector<16x8x128xi32>
    %cst_17 = arith.constant 0.000000e+00 : f32
    %44 = vector.broadcast %cst_17 : f32 to vector<16x8x128xf32>
    %45 = arith.select %43, %37, %44 : vector<16x8x128xi1>, vector<16x8x128xf32>
    %cst_18 = arith.constant dense<0xFF800000> : vector<16x128xf32>
    %46 = vector.multi_reduction <maximumf>, %45, %cst_18 [1] : vector<16x8x128xf32> to vector<16x128xf32>
    %47 = arith.maximumf %26, %46 : vector<16x128xf32>
    %cst_19 = arith.constant dense<0x7F800000> : vector<16x128xf32>
    %48 = vector.multi_reduction <minimumf>, %45, %cst_19 [1] : vector<16x8x128xf32> to vector<16x128xf32>
    %49 = arith.minimumf %27, %48 : vector<16x128xf32>
    %c1_i32 = arith.constant 1 : i32
    %c64_i32_20 = arith.constant 64 : i32
    %50 = tpu.dynamic_rotate %47 by %c64_i32_20 dim 1 : vector<16x128xf32>, i32 -> vector<16x128xf32>
    %51 = arith.maximumf %47, %50 : vector<16x128xf32>
    %52 = vector.extract_strided_slice %51 {offsets = [0, 0], sizes = [16, 64], strides = [1, 1]} : vector<16x128xf32> to vector<16x64xf32>
    %c64_i32_21 = arith.constant 64 : i32
    %53 = tpu.dynamic_rotate %49 by %c64_i32_21 dim 1 : vector<16x128xf32>, i32 -> vector<16x128xf32>
    %54 = arith.minimumf %49, %53 : vector<16x128xf32>
    %55 = vector.extract_strided_slice %54 {offsets = [0, 0], sizes = [16, 64], strides = [1, 1]} : vector<16x128xf32> to vector<16x64xf32>
    %c0_22 = arith.constant 0 : index
    %c0_23 = arith.constant 0 : index
    %56 = vector.load %arg5[%c0_22, %c0_23] : memref<1x64xf32, #tpu.memory_space<vmem>>, vector<1x64xf32>
    %57 = vector.broadcast %56 : vector<1x64xf32> to vector<16x64xf32>
    %58 = arith.addf %52, %57 : vector<16x64xf32>
    %59 = vector.broadcast %56 : vector<1x64xf32> to vector<16x64xf32>
    %60 = arith.addf %55, %59 : vector<16x64xf32>
    %cst_24 = arith.constant 5.000000e-01 : f32
    %61 = vector.broadcast %cst_24 : f32 to vector<16x64xf32>
    %62 = arith.mulf %61, %58 : vector<16x64xf32>
    %cst_25 = arith.constant 0.707106769 : f32
    %63 = vector.broadcast %cst_25 : f32 to vector<16x64xf32>
    %64 = arith.mulf %58, %63 : vector<16x64xf32>
    %65 = math.erf %64 : vector<16x64xf32>
    %cst_26 = arith.constant 1.000000e+00 : f32
    %66 = vector.broadcast %cst_26 : f32 to vector<16x64xf32>
    %67 = arith.addf %66, %65 : vector<16x64xf32>
    %68 = arith.mulf %62, %67 : vector<16x64xf32>
    %cst_27 = arith.constant 5.000000e-01 : f32
    %69 = vector.broadcast %cst_27 : f32 to vector<16x64xf32>
    %70 = arith.mulf %69, %60 : vector<16x64xf32>
    %cst_28 = arith.constant 0.707106769 : f32
    %71 = vector.broadcast %cst_28 : f32 to vector<16x64xf32>
    %72 = arith.mulf %60, %71 : vector<16x64xf32>
    %73 = math.erf %72 : vector<16x64xf32>
    %cst_29 = arith.constant 1.000000e+00 : f32
    %74 = vector.broadcast %cst_29 : f32 to vector<16x64xf32>
    %75 = arith.addf %74, %73 : vector<16x64xf32>
    %76 = arith.mulf %70, %75 : vector<16x64xf32>
    %77 = arith.maximumf %68, %76 : vector<16x64xf32>
    %c0_30 = arith.constant 0 : index
    %c0_31 = arith.constant 0 : index
    %78 = vector.load %arg6[%c0_30, %c0_31] : memref<16x64xf32, #tpu.memory_space<vmem>>, vector<16x64xf32>
    tpu.vector_store %arg6[%c0_30, %c0_31], %77 {strides = array<i32>} : memref<16x64xf32, #tpu.memory_space<vmem>>, vector<16x64xf32>,
    return
  }
  func.func @transform_0(%arg0: i32) -> (i32, i32, i32) {
    %c0_i32 = arith.constant 0 : i32
    %c0_i32_0 = arith.constant 0 : i32
    %c0_i32_1 = arith.constant 0 : i32
    return %arg0, %c0_i32, %c0_i32_0 : i32, i32, i32
  }
  func.func @transform_1(%arg0: i32) -> (i32, i32) {
    %c0_i32 = arith.constant 0 : i32
    %c0_i32_0 = arith.constant 0 : i32
    return %arg0, %c0_i32 : i32, i32
  }
  func.func @transform_2(%arg0: i32) -> (i32, i32) {
    %c0_i32 = arith.constant 0 : i32
    %c0_i32_0 = arith.constant 0 : i32
    %c0_i32_1 = arith.constant 0 : i32
    return %c0_i32, %c0_i32_0 : i32, i32
  }
  func.func @transform_3(%arg0: i32) -> (i32, i32) {
    %c0_i32 = arith.constant 0 : i32
    %c0_i32_0 = arith.constant 0 : i32
    %c0_i32_1 = arith.constant 0 : i32
    return %c0_i32, %c0_i32_0 : i32, i32
  }
  func.func @transform_4(%arg0: i32) -> (i32, i32) {
    %c0_i32 = arith.constant 0 : i32
    %c0_i32_0 = arith.constant 0 : i32
    %c0_i32_1 = arith.constant 0 : i32
    return %c0_i32, %c0_i32_0 : i32, i32
  }
  func.func @transform_5(%arg0: i32) -> (i32, i32) {
    %c0_i32 = arith.constant 0 : i32
    %c0_i32_0 = arith.constant 0 : i32
    return %arg0, %c0_i32 : i32, i32
  }
}

</mosaic_0001>

<llo_original>
// kernel: tpu_custom_call.1
$region0: #{tpu_custom_call.1}
  #allocation0 [shape = 'u32[]', space=smem, size = 0x4, offset = 0x4, fixed_abs, tag = 'smem constant byte address 0x4 - core index']
  #allocation1 [shape = 'u32[72,128]{1,0:T(1,128)}', space=vmem, size = 0x9000, scoped, tag = 'internal scratch']
  %s0 = inlined_call_operand.vmem [shape: f32[32,8,8], index: 0, kind: input, shape index: {}]
  %s1 = inlined_call_operand.vmem [shape: f32[32,8], index: 1, kind: input, shape index: {}]
  %s2 = inlined_call_operand.vmem [shape: f32[8,128], index: 2, kind: input, shape index: {}]
  %s3 = inlined_call_operand.vmem [shape: f32[6,128], index: 3, kind: input, shape index: {}]
  %s4 = inlined_call_operand.vmem [shape: f32[1,64], index: 4, kind: input, shape index: {}]
  %s5 = inlined_call_operand.hbm [shape: f32[32,64], index: 5, kind: output, shape index: {}]
  %s6 = sld [smem:[#allocation0]]
  $region53: #{tpu_custom_call.1} parent=0
    _
  %s8 = ssub.s32 1, %s6
  %s9 = scalar_select 0, %s8, %s6
  $region1: #{tpu_custom_call.1} parent=0
    #allocation2 [shape = 'u8[16384]{0}', space=vmem, size = 0x4000, scoped, tag = 'output window, operand 0']
    #allocation3 [shape = 's32[2]{0}', space=sflag, size = 0x8, scoped, tag = 'scoped memory for tpu_custom_call.1']
    %10 = vsyncpa [#allocation3], 0
    %s11 = scalar_lea.sflag [#allocation3], 1
    %12 = vsyncpa %s11, 0
    loop: start=0, step=1, limit=4
    $region2: #{tpu_custom_call.1} parent=1 // loop_pre_header
      _
    $region3: #{tpu_custom_call.1} parent=1 // loop_header
      %s14 = sphi 0, %s18
      %p15 = scmp.ge.s32.totalorder %s14, 4
      %s24 = sphi 0, %s26
      %s27 = sphi 0, %s24
      %s28 = sphi 0, %s27
      %s44 = sphi 0, %s28
      %s50 = sphi 0, %s52
      %s53 = sphi 0, %s50
      %s54 = sphi 0, %s53
      %s70 = sphi 0, %s54
      %s74 = sphi 0, %s74
      %s76 = sphi 0, %s74
      %s77 = sphi 0, %s76
      %s91 = sphi 0, %s77
      %s95 = sphi 0, %s95
      %s97 = sphi 0, %s95
      %s98 = sphi 0, %s97
      %s112 = sphi 0, %s98
      %s116 = sphi 0, %s116
      %s118 = sphi 0, %s116
      %s119 = sphi 0, %s118
      %s133 = sphi 0, %s119
      %s139 = sphi 0, %s141
      %s142 = sphi 0, %s139
      %s143 = sphi 0, %s142
      %s159 = sphi 0, %s143
    $region4: #{tpu_custom_call.1} parent=1 // loop_header_branch
      %17 = sbr.rel (%p15) target = $region8
    $region5: #{tpu_custom_call.1} parent=1 // loop_body
      %s19 = ssub.s32 %s14, 1
      %s20 = ssub.s32 %s14, 2
      %s21 = sadd.s32 %s14, 1
      %s22 = ssub.s32 %s14, %s21
      %p23 = scmp.eq.s32.totalorder %s22, 0
      %s25 = sadd.s32 %s24, 1
      %s26 = scalar_select %p23, %s24, %s25
      %p29 = pneg %p23
      %p30 = scmp.eq.s32.totalorder %s14, 1
      %p31 = por %p29, %p30
      %p32 = scmp.ne.s32.totalorder %s24, %s27
      %p33 = scmp.eq.s32.totalorder %s14, 0
      %p34 = por %p32, %p33
      %p35 = scmp.ne.s32.totalorder %s24, %s27
      %p36 = scmp.eq.s32.totalorder %s19, 1
      %p37 = por %p35, %p36
      %p38 = scmp.ne.s32.totalorder %s27, %s28
      %p39 = scmp.eq.s32.totalorder %s19, 0
      %p40 = por %p38, %p39
      %p41 = scmp.ne.s32.totalorder %s27, %s28
      %p42 = scmp.eq.s32.totalorder %s20, 1
      %p43 = por %p41, %p42
      %p45 = scmp.ne.s32.totalorder %s28, %s44
      %p46 = scmp.eq.s32.totalorder %s20, 0
      %p47 = por %p45, %p46
      %s48 = ssub.s32 %s14, %s21
      %p49 = scmp.eq.s32.totalorder %s48, 0
      %s51 = sadd.s32 %s50, 1
      %s52 = scalar_select %p49, %s50, %s51
      %p55 = pneg %p49
      %p56 = scmp.eq.s32.totalorder %s14, 1
      %p57 = por %p55, %p56
      %p58 = scmp.ne.s32.totalorder %s50, %s53
      %p59 = scmp.eq.s32.totalorder %s14, 0
      %p60 = por %p58, %p59
      %p61 = scmp.ne.s32.totalorder %s50, %s53
      %p62 = scmp.eq.s32.totalorder %s19, 1
      %p63 = por %p61, %p62
      %p64 = scmp.ne.s32.totalorder %s53, %s54
      %p65 = scmp.eq.s32.totalorder %s19, 0
      %p66 = por %p64, %p65
      %p67 = scmp.ne.s32.totalorder %s53, %s54
      %p68 = scmp.eq.s32.totalorder %s20, 1
      %p69 = por %p67, %p68
      %p71 = scmp.ne.s32.totalorder %s54, %s70
      %p72 = scmp.eq.s32.totalorder %s20, 0
      %p73 = por %p71, %p72
      %s75 = sadd.s32 %s74, 1
      %p78 = scmp.eq.s32.totalorder %s14, 1
      %p79 = scmp.ne.s32.totalorder %s74, %s76
      %p80 = scmp.eq.s32.totalorder %s14, 0
      %p81 = por %p79, %p80
      %p82 = scmp.ne.s32.totalorder %s74, %s76
      %p83 = scmp.eq.s32.totalorder %s19, 1
      %p84 = por %p82, %p83
      %p85 = scmp.ne.s32.totalorder %s76, %s77
      %p86 = scmp.eq.s32.totalorder %s19, 0
      %p87 = por %p85, %p86
      %p88 = scmp.ne.s32.totalorder %s76, %s77
      %p89 = scmp.eq.s32.totalorder %s20, 1
      %p90 = por %p88, %p89
      %p92 = scmp.ne.s32.totalorder %s77, %s91
      %p93 = scmp.eq.s32.totalorder %s20, 0
      %p94 = por %p92, %p93
      %s96 = sadd.s32 %s95, 1
      %p99 = scmp.eq.s32.totalorder %s14, 1
      %p100 = scmp.ne.s32.totalorder %s95, %s97
      %p101 = scmp.eq.s32.totalorder %s14, 0
      %p102 = por %p100, %p101
      %p103 = scmp.ne.s32.totalorder %s95, %s97
      %p104 = scmp.eq.s32.totalorder %s19, 1
      %p105 = por %p103, %p104
      %p106 = scmp.ne.s32.totalorder %s97, %s98
      %p107 = scmp.eq.s32.totalorder %s19, 0
      %p108 = por %p106, %p107
      %p109 = scmp.ne.s32.totalorder %s97, %s98
      %p110 = scmp.eq.s32.totalorder %s20, 1
      %p111 = por %p109, %p110
      %p113 = scmp.ne.s32.totalorder %s98, %s112
      %p114 = scmp.eq.s32.totalorder %s20, 0
      %p115 = por %p113, %p114
      %s117 = sadd.s32 %s116, 1
      %p120 = scmp.eq.s32.totalorder %s14, 1
      %p121 = scmp.ne.s32.totalorder %s116, %s118
      %p122 = scmp.eq.s32.totalorder %s14, 0
      %p123 = por %p121, %p122
      %p124 = scmp.ne.s32.totalorder %s116, %s118
      %p125 = scmp.eq.s32.totalorder %s19, 1
      %p126 = por %p124, %p125
      %p127 = scmp.ne.s32.totalorder %s118, %s119
      %p128 = scmp.eq.s32.totalorder %s19, 0
      %p129 = por %p127, %p128
      %p130 = scmp.ne.s32.totalorder %s118, %s119
      %p131 = scmp.eq.s32.totalorder %s20, 1
      %p132 = por %p130, %p131
      %p134 = scmp.ne.s32.totalorder %s119, %s133
      %p135 = scmp.eq.s32.totalorder %s20, 0
      %p136 = por %p134, %p135
      %s137 = ssub.s32 %s14, %s21
      %p138 = scmp.eq.s32.totalorder %s137, 0
      %s140 = sadd.s32 %s139, 1
      %s141 = scalar_select %p138, %s139, %s140
      %p144 = pneg %p138
      %p145 = scmp.eq.s32.totalorder %s14, 1
      %p146 = por %p144, %p145
      %p147 = scmp.ne.s32.totalorder %s139, %s142
      %p148 = scmp.eq.s32.totalorder %s14, 0
      %p149 = por %p147, %p148
      %p150 = scmp.ne.s32.totalorder %s139, %s142
      %p151 = scmp.eq.s32.totalorder %s19, 1
      %p152 = por %p150, %p151
      %p153 = scmp.ne.s32.totalorder %s142, %s143
      %p154 = scmp.eq.s32.totalorder %s19, 0
      %p155 = por %p153, %p154
      %p156 = scmp.ne.s32.totalorder %s142, %s143
      %p157 = scmp.eq.s32.totalorder %s20, 1
      %p158 = por %p156, %p157
      %p160 = scmp.ne.s32.totalorder %s143, %s159
      %p161 = scmp.eq.s32.totalorder %s20, 0
      %p162 = por %p160, %p161
      %p163 = scmp.le.s32.totalorder 1, %s14
      %p164 = scmp.lt.s32.totalorder %s14, 3
      %p165 = pnand %p163, %p164
      %p166 = pneg %p165
      // Predicated region
      $region9: #{tpu_custom_call.1} parent=5 // pred_check
        _
      $region10: #{tpu_custom_call.1} parent=5 // pred_check_branch
        %168 = sbr.rel (%p165) target = $region12
      $region11: #{tpu_custom_call.1} parent=5 // pred_region
        %s169 = ssub.s32 %s14, 1
        // Predicated region
        $region13: #{tpu_custom_call.1} parent=11 // pred_check
          %p170 = pneg %p87
        $region14: #{tpu_custom_call.1} parent=11 // pred_check_branch
          %172 = sbr.rel (%p170) target = $region16
        $region15: #{tpu_custom_call.1} parent=11 // pred_region
          _
        $region16: #{tpu_custom_call.1} parent=11 // pred_fallthru
          _
        // Predicated region
        $region17: #{tpu_custom_call.1} parent=11 // pred_check
          %p173 = pneg %p108
        $region18: #{tpu_custom_call.1} parent=11 // pred_check_branch
          %175 = sbr.rel (%p173) target = $region20
        $region19: #{tpu_custom_call.1} parent=11 // pred_region
          _
        $region20: #{tpu_custom_call.1} parent=11 // pred_fallthru
          _
        // Predicated region
        $region21: #{tpu_custom_call.1} parent=11 // pred_check
          %p176 = pneg %p129
        $region22: #{tpu_custom_call.1} parent=11 // pred_check_branch
          %178 = sbr.rel (%p176) target = $region24
        $region23: #{tpu_custom_call.1} parent=11 // pred_region
          _
        $region24: #{tpu_custom_call.1} parent=11 // pred_fallthru
          _
      $region12: #{tpu_custom_call.1} parent=5 // pred_fallthru
        _
      %p179 = scmp.lt.s32.totalorder %s14, 2
      // Predicated region
      $region25: #{tpu_custom_call.1} parent=5 // pred_check
        %p180 = pneg %p179
      $region26: #{tpu_custom_call.1} parent=5 // pred_check_branch
        %182 = sbr.rel (%p180) target = $region28
      $region27: #{tpu_custom_call.1} parent=5 // pred_region
        // Predicated region
        $region29: #{tpu_custom_call.1} parent=27 // pred_check
          %p183 = pneg %p34
        $region30: #{tpu_custom_call.1} parent=27 // pred_check_branch
          %185 = sbr.rel (%p183) target = $region32
        $region31: #{tpu_custom_call.1} parent=27 // pred_region
          %s186 = smul.u32 16, %s14
          %p187 = scmp.lt.s32.totalorder %s186, 31
          %s188 = scalar_select %p187, %s186, 31
          %s189 = smul.addr %s188, 8
          %s190 = scalar_lea.vmem %s0, %s189
          %s191 = smul.u32 16, %s14
        $region32: #{tpu_custom_call.1} parent=27 // pred_fallthru
          _
        // Predicated region
        $region33: #{tpu_custom_call.1} parent=27 // pred_check
          %p192 = pneg %p60
        $region34: #{tpu_custom_call.1} parent=27 // pred_check_branch
          %194 = sbr.rel (%p192) target = $region36
        $region35: #{tpu_custom_call.1} parent=27 // pred_region
          %s195 = smul.u32 2, %s14
          %p196 = scmp.lt.s32.totalorder %s195, 3
          %s197 = scalar_select %p196, %s195, 3
          %s198 = smul.addr %s197, 8
          %s199 = scalar_lea.vmem %s1, %s198
          %s200 = smul.u32 2, %s14
        $region36: #{tpu_custom_call.1} parent=27 // pred_fallthru
          _
      $region28: #{tpu_custom_call.1} parent=5 // pred_fallthru
        _
      %p201 = scmp.le.s32.totalorder 1, %s14
      %p202 = scmp.lt.s32.totalorder %s14, 3
      %p203 = pnand %p201, %p202
      %p204 = pneg %p203
      // Predicated region
      $region37: #{tpu_custom_call.1} parent=5 // pred_check
        _
      $region38: #{tpu_custom_call.1} parent=5 // pred_check_branch
        %206 = sbr.rel (%p203) target = $region40
      $region39: #{tpu_custom_call.1} parent=5 // pred_region
        %s207 = ssub.s32 %s14, 1
        %s208 = smul.u32 16, %s19
        %p209 = scmp.lt.s32.totalorder %s208, 31
        %s210 = scalar_select %p209, %s208, 31
        %s211 = smul.addr %s210, 8
        %s212 = scalar_lea.vmem %s0, %s211
        %p213 = pneg %p40
        %p214 = pneg %p37
        %s215 = smul.u32 2, %s19
        %p216 = scmp.lt.s32.totalorder %s215, 3
        %s217 = scalar_select %p216, %s215, 3
        %s218 = smul.addr %s217, 8
        %s219 = scalar_lea.vmem %s1, %s218
        %p220 = pneg %p66
        %p221 = pneg %p63
        %p222 = pneg %p87
        %p223 = pneg %p84
        %p224 = pneg %p108
        %p225 = pneg %p105
        %p226 = pneg %p129
        %p227 = pneg %p126
        %p228 = pneg %p155
        %p229 = pneg %p152
        %s230 = sand.u32 %s142, 1
        %s231 = scalar_lea.sflag [#allocation3], %s230
        %s232 = sand.u32 %s142, 1
        %s233 = smul.addr %s232, 16
        %s234 = scalar_lea.vmem [#allocation2], %s233
        %s235 = smul.u32 16, %s19
        %p236 = scmp.lt.s32.totalorder %s235, 31
        %s237 = scalar_select %p236, %s235, 31
        %s238 = smul.addr %s237, 8
        %s239 = scalar_lea.vmem %s0, %s238
        %s240 = smul.u32 16, %s19
        %s241 = smul.u32 2, %s19
        %p242 = scmp.lt.s32.totalorder %s241, 3
        %s243 = scalar_select %p242, %s241, 3
        %s244 = smul.addr %s243, 8
        %s245 = scalar_lea.vmem %s1, %s244
        %s246 = smul.u32 2, %s19
        %s247 = smul.u32 2, %s19
        %v248 = vld [vmem:[%s245] sm:$0xff]
        %v249 = vld [vmem:[%s245 + $0x8] sm:$0xff]
        %v250 = vld [vmem:[%s239] sm:$0xff]
        %v251 = vld [vmem:[%s239 + $0x8] sm:$0xff]
        %v252 = vld [vmem:[%s239 + $0x10] sm:$0xff]
        %v253 = vld [vmem:[%s239 + $0x18] sm:$0xff]
        %v254 = vld [vmem:[%s239 + $0x20] sm:$0xff]
        %v255 = vld [vmem:[%s239 + $0x28] sm:$0xff]
        %v256 = vld [vmem:[%s239 + $0x30] sm:$0xff]
        %v257 = vld [vmem:[%s239 + $0x38] sm:$0xff]
        %v258 = vld [vmem:[%s239 + $0x40] sm:$0xff]
        %v259 = vld [vmem:[%s239 + $0x48] sm:$0xff]
        %v260 = vld [vmem:[%s239 + $0x50] sm:$0xff]
        %v261 = vld [vmem:[%s239 + $0x58] sm:$0xff]
        %v262 = vld [vmem:[%s239 + $0x60] sm:$0xff]
        %v263 = vld [vmem:[%s239 + $0x68] sm:$0xff]
        %v264 = vld [vmem:[%s239 + $0x70] sm:$0xff]
        %v265 = vld [vmem:[%s239 + $0x78] sm:$0xff]
        %vm266 = vcmask 64512
        %v267 = vsel %vm266, %v250, 0.0
        %v268 = vrot.slane %v267, 4
        %v269 = vadd.f32 %v267, %v268
        %v270 = vrot.slane %v269, 2
        %v271 = vadd.f32 %v269, %v270
        %v272 = vrot.slane %v271, 1
        %v273 = vadd.f32 %v271, %v272
        %v274 = vsel %vm266, %v251, 0.0
        %v275 = vrot.slane %v274, 4
        %v276 = vadd.f32 %v274, %v275
        %v277 = vrot.slane %v276, 2
        %v278 = vadd.f32 %v276, %v277
        %v279 = vrot.slane %v278, 1
        %v280 = vadd.f32 %v278, %v279
        %v281 = vsel %vm266, %v252, 0.0
        %v282 = vrot.slane %v281, 4
        %v283 = vadd.f32 %v281, %v282
        %v284 = vrot.slane %v283, 2
        %v285 = vadd.f32 %v283, %v284
        %v286 = vrot.slane %v285, 1
        %v287 = vadd.f32 %v285, %v286
        %v288 = vsel %vm266, %v253, 0.0
        %v289 = vrot.slane %v288, 4
        %v290 = vadd.f32 %v288, %v289
        %v291 = vrot.slane %v290, 2
        %v292 = vadd.f32 %v290, %v291
        %v293 = vrot.slane %v292, 1
        %v294 = vadd.f32 %v292, %v293
        %v295 = vsel %vm266, %v254, 0.0
        %v296 = vrot.slane %v295, 4
        %v297 = vadd.f32 %v295, %v296
        %v298 = vrot.slane %v297, 2
        %v299 = vadd.f32 %v297, %v298
        %v300 = vrot.slane %v299, 1
        %v301 = vadd.f32 %v299, %v300
        %v302 = vsel %vm266, %v255, 0.0
        %v303 = vrot.slane %v302, 4
        %v304 = vadd.f32 %v302, %v303
        %v305 = vrot.slane %v304, 2
        %v306 = vadd.f32 %v304, %v305
        %v307 = vrot.slane %v306, 1
        %v308 = vadd.f32 %v306, %v307
        %v309 = vsel %vm266, %v256, 0.0
        %v310 = vrot.slane %v309, 4
        %v311 = vadd.f32 %v309, %v310
        %v312 = vrot.slane %v311, 2
        %v313 = vadd.f32 %v311, %v312
        %v314 = vrot.slane %v313, 1
        %v315 = vadd.f32 %v313, %v314
        %v316 = vsel %vm266, %v257, 0.0
        %v317 = vrot.slane %v316, 4
        %v318 = vadd.f32 %v316, %v317
        %v319 = vrot.slane %v318, 2
        %v320 = vadd.f32 %v318, %v319
        %v321 = vrot.slane %v320, 1
        %v322 = vadd.f32 %v320, %v321
        %v323 = vsel %vm266, %v258, 0.0
        %v324 = vrot.slane %v323, 4
        %v325 = vadd.f32 %v323, %v324
        %v326 = vrot.slane %v325, 2
        %v327 = vadd.f32 %v325, %v326
        %v328 = vrot.slane %v327, 1
        %v329 = vadd.f32 %v327, %v328
        %v330 = vsel %vm266, %v259, 0.0
        %v331 = vrot.slane %v330, 4
        %v332 = vadd.f32 %v330, %v331
        %v333 = vrot.slane %v332, 2
        %v334 = vadd.f32 %v332, %v333
        %v335 = vrot.slane %v334, 1
        %v336 = vadd.f32 %v334, %v335
        %v337 = vsel %vm266, %v260, 0.0
        %v338 = vrot.slane %v337, 4
        %v339 = vadd.f32 %v337, %v338
        %v340 = vrot.slane %v339, 2
        %v341 = vadd.f32 %v339, %v340
        %v342 = vrot.slane %v341, 1
        %v343 = vadd.f32 %v341, %v342
        %v344 = vsel %vm266, %v261, 0.0
        %v345 = vrot.slane %v344, 4
        %v346 = vadd.f32 %v344, %v345
        %v347 = vrot.slane %v346, 2
        %v348 = vadd.f32 %v346, %v347
        %v349 = vrot.slane %v348, 1
        %v350 = vadd.f32 %v348, %v349
        %v351 = vsel %vm266, %v262, 0.0
        %v352 = vrot.slane %v351, 4
        %v353 = vadd.f32 %v351, %v352
        %v354 = vrot.slane %v353, 2
        %v355 = vadd.f32 %v353, %v354
        %v356 = vrot.slane %v355, 1
        %v357 = vadd.f32 %v355, %v356
        %v358 = vsel %vm266, %v263, 0.0
        %v359 = vrot.slane %v358, 4
        %v360 = vadd.f32 %v358, %v359
        %v361 = vrot.slane %v360, 2
        %v362 = vadd.f32 %v360, %v361
        %v363 = vrot.slane %v362, 1
        %v364 = vadd.f32 %v362, %v363
        %v365 = vsel %vm266, %v264, 0.0
        %v366 = vrot.slane %v365, 4
        %v367 = vadd.f32 %v365, %v366
        %v368 = vrot.slane %v367, 2
        %v369 = vadd.f32 %v367, %v368
        %v370 = vrot.slane %v369, 1
        %v371 = vadd.f32 %v369, %v370
        %v372 = vsel %vm266, %v265, 0.0
        %v373 = vrot.slane %v372, 4
        %v374 = vadd.f32 %v372, %v373
        %v375 = vrot.slane %v374, 2
        %v376 = vadd.f32 %v374, %v375
        %v377 = vrot.slane %v376, 1
        %v378 = vadd.f32 %v376, %v377
        %395 = vrot.lane.b32.xlu0 %v273, 124
        %v396 = vpop.permute.xlu0 %395
        %397 = vrot.lane.b32.xlu0 %v280, 124
        %v398 = vpop.permute.xlu0 %397
        %399 = vrot.lane.b32.xlu0 %v287, 124
        %v400 = vpop.permute.xlu0 %399
        %401 = vrot.lane.b32.xlu0 %v294, 124
        %v402 = vpop.permute.xlu0 %401
        %403 = vrot.lane.b32.xlu0 %v301, 124
        %v404 = vpop.permute.xlu0 %403
        %405 = vrot.lane.b32.xlu0 %v308, 124
        %v406 = vpop.permute.xlu0 %405
        %407 = vrot.lane.b32.xlu0 %v315, 124
        %v408 = vpop.permute.xlu0 %407
        %409 = vrot.lane.b32.xlu0 %v322, 124
        %v410 = vpop.permute.xlu0 %409
        %411 = vrot.lane.b32.xlu0 %v329, 124
        %v412 = vpop.permute.xlu0 %411
        %413 = vrot.lane.b32.xlu0 %v336, 124
        %v414 = vpop.permute.xlu0 %413
        %415 = vrot.lane.b32.xlu0 %v343, 124
        %v416 = vpop.permute.xlu0 %415
        %417 = vrot.lane.b32.xlu0 %v350, 124
        %v418 = vpop.permute.xlu0 %417
        %419 = vrot.lane.b32.xlu0 %v357, 124
        %v420 = vpop.permute.xlu0 %419
        %421 = vrot.lane.b32.xlu0 %v364, 124
        %v422 = vpop.permute.xlu0 %421
        %423 = vrot.lane.b32.xlu0 %v371, 124
        %v424 = vpop.permute.xlu0 %423
        %425 = vrot.lane.b32.xlu0 %v378, 124
        %v426 = vpop.permute.xlu0 %425
        %v443 = vadd.f32 %v273, %v396
        %v444 = vadd.f32 %v280, %v398
        %v445 = vadd.f32 %v287, %v400
        %v446 = vadd.f32 %v294, %v402
        %v447 = vadd.f32 %v301, %v404
        %v448 = vadd.f32 %v308, %v406
        %v449 = vadd.f32 %v315, %v408
        %v450 = vadd.f32 %v322, %v410
        %v451 = vadd.f32 %v329, %v412
        %v452 = vadd.f32 %v336, %v414
        %v453 = vadd.f32 %v343, %v416
        %v454 = vadd.f32 %v350, %v418
        %v455 = vadd.f32 %v357, %v420
        %v456 = vadd.f32 %v364, %v422
        %v457 = vadd.f32 %v371, %v424
        %v458 = vadd.f32 %v378, %v426
        %v459 = vmax.f32 %v248, 1.0
        %v460 = vmax.f32 %v249, 1.0
        %462 = vset.pattern.permute.xlu0 0
        %463 = vperm.xlu0 %462, %v459
        %v464 = vpop.permute.xlu0 %463
        %466 = vset.pattern.permute.xlu0 0
        %467 = vperm.xlu0 %466, %v460
        %v468 = vpop.permute.xlu0 %467
        %v469 = vrot.slane %v464, 1
        %v470 = vrot.slane %v464, 2
        %v471 = vrot.slane %v464, 3
        %v472 = vrot.slane %v464, 4
        %v473 = vrot.slane %v464, 5
        %v474 = vrot.slane %v464, 6
        %v475 = vrot.slane %v464, 7
        %v476 = vrot.slane %v468, 1
        %v477 = vrot.slane %v468, 2
        %v478 = vrot.slane %v468, 3
        %v479 = vrot.slane %v468, 4
        %v480 = vrot.slane %v468, 5
        %v481 = vrot.slane %v468, 6
        %v482 = vrot.slane %v468, 7
        %v499 = vrcp.pop %v464
        %v500 = vmul.f32 %v464, %v499
        %v501 = vsub.f32 1.0, %v500
        %v502 = vmul.f32 %v499, %v501
        %v503 = vadd.f32 %v499, %v502
        %vm504 = vweird.f32 %v464
        %vm505 = vweird.f32 %v499
        %vm506 = vmor %vm504, %vm505
        %v507 = vsel %vm506, %v499, %v503
        %v508 = vand.u32 2147483647, %v464
        %vm509 = vcmp.eq.f32.partialorder %v508, 8.507059e+37
        %v510 = vand.u32 %v464, 2147483648
        %v511 = vor.u32 1.1754944e-38, %v510
        %v512 = vsel %vm509, %v511, %v507
        %v513 = vmul.f32 %v443, %v512
        %v514 = vrcp.pop %v469
        %v515 = vmul.f32 %v469, %v514
        %v516 = vsub.f32 1.0, %v515
        %v517 = vmul.f32 %v514, %v516
        %v518 = vadd.f32 %v514, %v517
        %vm519 = vweird.f32 %v469
        %vm520 = vweird.f32 %v514
        %vm521 = vmor %vm519, %vm520
        %v522 = vsel %vm521, %v514, %v518
        %v523 = vand.u32 2147483647, %v469
        %vm524 = vcmp.eq.f32.partialorder %v523, 8.507059e+37
        %v525 = vand.u32 %v469, 2147483648
        %v526 = vor.u32 1.1754944e-38, %v525
        %v527 = vsel %vm524, %v526, %v522
        %v528 = vmul.f32 %v444, %v527
        %v529 = vrcp.pop %v470
        %v530 = vmul.f32 %v470, %v529
        %v531 = vsub.f32 1.0, %v530
        %v532 = vmul.f32 %v529, %v531
        %v533 = vadd.f32 %v529, %v532
        %vm534 = vweird.f32 %v470
        %vm535 = vweird.f32 %v529
        %vm536 = vmor %vm534, %vm535
        %v537 = vsel %vm536, %v529, %v533
        %v538 = vand.u32 2147483647, %v470
        %vm539 = vcmp.eq.f32.partialorder %v538, 8.507059e+37
        %v540 = vand.u32 %v470, 2147483648
        %v541 = vor.u32 1.1754944e-38, %v540
        %v542 = vsel %vm539, %v541, %v537
        %v543 = vmul.f32 %v445, %v542
        %v544 = vrcp.pop %v471
        %v545 = vmul.f32 %v471, %v544
        %v546 = vsub.f32 1.0, %v545
        %v547 = vmul.f32 %v544, %v546
        %v548 = vadd.f32 %v544, %v547
        %vm549 = vweird.f32 %v471
        %vm550 = vweird.f32 %v544
        %vm551 = vmor %vm549, %vm550
        %v552 = vsel %vm551, %v544, %v548
        %v553 = vand.u32 2147483647, %v471
        %vm554 = vcmp.eq.f32.partialorder %v553, 8.507059e+37
        %v555 = vand.u32 %v471, 2147483648
        %v556 = vor.u32 1.1754944e-38, %v555
        %v557 = vsel %vm554, %v556, %v552
        %v558 = vmul.f32 %v446, %v557
        %v559 = vrcp.pop %v472
        %v560 = vmul.f32 %v472, %v559
        %v561 = vsub.f32 1.0, %v560
        %v562 = vmul.f32 %v559, %v561
        %v563 = vadd.f32 %v559, %v562
        %vm564 = vweird.f32 %v472
        %vm565 = vweird.f32 %v559
        %vm566 = vmor %vm564, %vm565
        %v567 = vsel %vm566, %v559, %v563
        %v568 = vand.u32 2147483647, %v472
        %vm569 = vcmp.eq.f32.partialorder %v568, 8.507059e+37
        %v570 = vand.u32 %v472, 2147483648
        %v571 = vor.u32 1.1754944e-38, %v570
        %v572 = vsel %vm569, %v571, %v567
        %v573 = vmul.f32 %v447, %v572
        %v574 = vrcp.pop %v473
        %v575 = vmul.f32 %v473, %v574
        %v576 = vsub.f32 1.0, %v575
        %v577 = vmul.f32 %v574, %v576
        %v578 = vadd.f32 %v574, %v577
        %vm579 = vweird.f32 %v473
        %vm580 = vweird.f32 %v574
        %vm581 = vmor %vm579, %vm580
        %v582 = vsel %vm581, %v574, %v578
        %v583 = vand.u32 2147483647, %v473
        %vm584 = vcmp.eq.f32.partialorder %v583, 8.507059e+37
        %v585 = vand.u32 %v473, 2147483648
        %v586 = vor.u32 1.1754944e-38, %v585
        %v587 = vsel %vm584, %v586, %v582
        %v588 = vmul.f32 %v448, %v587
        %v589 = vrcp.pop %v474
        %v590 = vmul.f32 %v474, %v589
        %v591 = vsub.f32 1.0, %v590
        %v592 = vmul.f32 %v589, %v591
        %v593 = vadd.f32 %v589, %v592
        %vm594 = vweird.f32 %v474
        %vm595 = vweird.f32 %v589
        %vm596 = vmor %vm594, %vm595
        %v597 = vsel %vm596, %v589, %v593
        %v598 = vand.u32 2147483647, %v474
        %vm599 = vcmp.eq.f32.partialorder %v598, 8.507059e+37
        %v600 = vand.u32 %v474, 2147483648
        %v601 = vor.u32 1.1754944e-38, %v600
        %v602 = vsel %vm599, %v601, %v597
        %v603 = vmul.f32 %v449, %v602
        %v604 = vrcp.pop %v475
        %v605 = vmul.f32 %v475, %v604
        %v606 = vsub.f32 1.0, %v605
        %v607 = vmul.f32 %v604, %v606
        %v608 = vadd.f32 %v604, %v607
        %vm609 = vweird.f32 %v475
        %vm610 = vweird.f32 %v604
        %vm611 = vmor %vm609, %vm610
        %v612 = vsel %vm611, %v604, %v608
        %v613 = vand.u32 2147483647, %v475
        %vm614 = vcmp.eq.f32.partialorder %v613, 8.507059e+37
        %v615 = vand.u32 %v475, 2147483648
        %v616 = vor.u32 1.1754944e-38, %v615
        %v617 = vsel %vm614, %v616, %v612
        %v618 = vmul.f32 %v450, %v617
        %v619 = vrcp.pop %v468
        %v620 = vmul.f32 %v468, %v619
        %v621 = vsub.f32 1.0, %v620
        %v622 = vmul.f32 %v619, %v621
        %v623 = vadd.f32 %v619, %v622
        %vm624 = vweird.f32 %v468
        %vm625 = vweird.f32 %v619
        %vm626 = vmor %vm624, %vm625
        %v627 = vsel %vm626, %v619, %v623
        %v628 = vand.u32 2147483647, %v468
        %vm629 = vcmp.eq.f32.partialorder %v628, 8.507059e+37
        %v630 = vand.u32 %v468, 2147483648
        %v631 = vor.u32 1.1754944e-38, %v630
        %v632 = vsel %vm629, %v631, %v627
        %v633 = vmul.f32 %v451, %v632
        %v634 = vrcp.pop %v476
        %v635 = vmul.f32 %v476, %v634
        %v636 = vsub.f32 1.0, %v635
        %v637 = vmul.f32 %v634, %v636
        %v638 = vadd.f32 %v634, %v637
        %vm639 = vweird.f32 %v476
        %vm640 = vweird.f32 %v634
        %vm641 = vmor %vm639, %vm640
        %v642 = vsel %vm641, %v634, %v638
        %v643 = vand.u32 2147483647, %v476
        %vm644 = vcmp.eq.f32.partialorder %v643, 8.507059e+37
        %v645 = vand.u32 %v476, 2147483648
        %v646 = vor.u32 1.1754944e-38, %v645
        %v647 = vsel %vm644, %v646, %v642
        %v648 = vmul.f32 %v452, %v647
        %v649 = vrcp.pop %v477
        %v650 = vmul.f32 %v477, %v649
        %v651 = vsub.f32 1.0, %v650
        %v652 = vmul.f32 %v649, %v651
        %v653 = vadd.f32 %v649, %v652
        %vm654 = vweird.f32 %v477
        %vm655 = vweird.f32 %v649
        %vm656 = vmor %vm654, %vm655
        %v657 = vsel %vm656, %v649, %v653
        %v658 = vand.u32 2147483647, %v477
        %vm659 = vcmp.eq.f32.partialorder %v658, 8.507059e+37
        %v660 = vand.u32 %v477, 2147483648
        %v661 = vor.u32 1.1754944e-38, %v660
        %v662 = vsel %vm659, %v661, %v657
        %v663 = vmul.f32 %v453, %v662
        %v664 = vrcp.pop %v478
        %v665 = vmul.f32 %v478, %v664
        %v666 = vsub.f32 1.0, %v665
        %v667 = vmul.f32 %v664, %v666
        %v668 = vadd.f32 %v664, %v667
        %vm669 = vweird.f32 %v478
        %vm670 = vweird.f32 %v664
        %vm671 = vmor %vm669, %vm670
        %v672 = vsel %vm671, %v664, %v668
        %v673 = vand.u32 2147483647, %v478
        %vm674 = vcmp.eq.f32.partialorder %v673, 8.507059e+37
        %v675 = vand.u32 %v478, 2147483648
        %v676 = vor.u32 1.1754944e-38, %v675
        %v677 = vsel %vm674, %v676, %v672
        %v678 = vmul.f32 %v454, %v677
        %v679 = vrcp.pop %v479
        %v680 = vmul.f32 %v479, %v679
        %v681 = vsub.f32 1.0, %v680
        %v682 = vmul.f32 %v679, %v681
        %v683 = vadd.f32 %v679, %v682
        %vm684 = vweird.f32 %v479
        %vm685 = vweird.f32 %v679
        %vm686 = vmor %vm684, %vm685
        %v687 = vsel %vm686, %v679, %v683
        %v688 = vand.u32 2147483647, %v479
        %vm689 = vcmp.eq.f32.partialorder %v688, 8.507059e+37
        %v690 = vand.u32 %v479, 2147483648
        %v691 = vor.u32 1.1754944e-38, %v690
        %v692 = vsel %vm689, %v691, %v687
        %v693 = vmul.f32 %v455, %v692
        %v694 = vrcp.pop %v480
        %v695 = vmul.f32 %v480, %v694
        %v696 = vsub.f32 1.0, %v695
        %v697 = vmul.f32 %v694, %v696
        %v698 = vadd.f32 %v694, %v697
        %vm699 = vweird.f32 %v480
        %vm700 = vweird.f32 %v694
        %vm701 = vmor %vm699, %vm700
        %v702 = vsel %vm701, %v694, %v698
        %v703 = vand.u32 2147483647, %v480
        %vm704 = vcmp.eq.f32.partialorder %v703, 8.507059e+37
        %v705 = vand.u32 %v480, 2147483648
        %v706 = vor.u32 1.1754944e-38, %v705
        %v707 = vsel %vm704, %v706, %v702
        %v708 = vmul.f32 %v456, %v707
        %v709 = vrcp.pop %v481
        %v710 = vmul.f32 %v481, %v709
        %v711 = vsub.f32 1.0, %v710
        %v712 = vmul.f32 %v709, %v711
        %v713 = vadd.f32 %v709, %v712
        %vm714 = vweird.f32 %v481
        %vm715 = vweird.f32 %v709
        %vm716 = vmor %vm714, %vm715
        %v717 = vsel %vm716, %v709, %v713
        %v718 = vand.u32 2147483647, %v481
        %vm719 = vcmp.eq.f32.partialorder %v718, 8.507059e+37
        %v720 = vand.u32 %v481, 2147483648
        %v721 = vor.u32 1.1754944e-38, %v720
        %v722 = vsel %vm719, %v721, %v717
        %v723 = vmul.f32 %v457, %v722
        %v724 = vrcp.pop %v482
        %v725 = vmul.f32 %v482, %v724
        %v726 = vsub.f32 1.0, %v725
        %v727 = vmul.f32 %v724, %v726
        %v728 = vadd.f32 %v724, %v727
        %vm729 = vweird.f32 %v482
        %vm730 = vweird.f32 %v724
        %vm731 = vmor %vm729, %vm730
        %v732 = vsel %vm731, %v724, %v728
        %v733 = vand.u32 2147483647, %v482
        %vm734 = vcmp.eq.f32.partialorder %v733, 8.507059e+37
        %v735 = vand.u32 %v482, 2147483648
        %v736 = vor.u32 1.1754944e-38, %v735
        %v737 = vsel %vm734, %v736, %v732
        %v738 = vmul.f32 %v458, %v737
        %v755 = vrot.slane %v528, 7
        %vm756 = vcmask 1041409
        %v757 = vsel %vm756, %v755, %v513
        %v758 = vrot.slane %v543, 6
        %vm759 = vcmask 1042434
        %v760 = vsel %vm759, %v758, %v757
        %v761 = vrot.slane %v558, 5
        %vm762 = vcmask 1043459
        %v763 = vsel %vm762, %v761, %v760
        %v764 = vrot.slane %v573, 4
        %vm765 = vcmask 1044484
        %v766 = vsel %vm765, %v764, %v763
        %v767 = vrot.slane %v588, 3
        %vm768 = vcmask 1045509
        %v769 = vsel %vm768, %v767, %v766
        %v770 = vrot.slane %v603, 2
        %vm771 = vcmask 1046534
        %v772 = vsel %vm771, %v770, %v769
        %v773 = vrot.slane %v618, 1
        %vm774 = vcmask 1047559
        %v775 = vsel %vm774, %v773, %v772
        %v776 = vrot.slane %v648, 7
        %v777 = vsel %vm756, %v776, %v633
        %v778 = vrot.slane %v663, 6
        %v779 = vsel %vm759, %v778, %v777
        %v780 = vrot.slane %v678, 5
        %v781 = vsel %vm762, %v780, %v779
        %v782 = vrot.slane %v693, 4
        %v783 = vsel %vm765, %v782, %v781
        %v784 = vrot.slane %v708, 3
        %v785 = vsel %vm768, %v784, %v783
        %v786 = vrot.slane %v723, 2
        %v787 = vsel %vm771, %v786, %v785
        %v788 = vrot.slane %v738, 1
        %v789 = vsel %vm774, %v788, %v787
        %794 = vrot.lane.b32.xlu0 %v248, 2
        %v795 = vpop.permute.xlu0 %794
        %796 = vrot.lane.b32.xlu0 %v249, 2
        %v797 = vpop.permute.xlu0 %796
        %vm800 = vcmask 23552
        %v801 = vsel %vm800, %v775, %v795
        %v802 = vsel %vm800, %v789, %v797
        %v803 = vld [vmem:[%s3] sm:$0x3f]
        %vm804 = vcmask 48128
        %v806 = vsel %vm804, %v801, 0
        %v809 = vsel %vm804, %v802, 0
        %vm811 = vcmask 1045504
        %v813 = vsel %vm811, %v803, 0
        %815 = vmatpush.msra.mxu0 0.0
        %816 = vmatpush.msra.mxu0 0.0
        %817 = vmatpush.msra.mxu0 0.0
        %818 = vmatpush.msra.mxu0 0.0
        %819 = vmatpush.msra.mxu0 0.0
        %820 = vmatpush.msra.mxu0 0.0
        %821 = vmatpush.msra.mxu0 0.0
        %822 = vmatpush.msra.mxu0 0.0
        %823 = vmatpush.msra.mxu0 0.0
        %824 = vmatpush.msra.mxu0 0.0
        %825 = vmatpush.msra.mxu0 0.0
        %826 = vmatpush.msra.mxu0 0.0
        %827 = vmatpush.msra.mxu0 0.0
        %828 = vmatpush.msra.mxu0 0.0
        %829 = vmatpush.msra.mxu0 0.0
        %830 = vmatpush.msra.mxu0 %v813
        %831 = vmatmul.f32.gmra.mxu0 %v806
        %v832 = vpop.f32.mrf.mxu0
        %v833 = vadd.f32 0.0, %v832
        %834 = vmatmul.f32.gmra.mxu0 %v809
        %v835 = vpop.f32.mrf.mxu0
        %v836 = vadd.f32 0.0, %v835
        %837 = vdwg.mxu0
        %v838 = vlaneseq
        %v839 = vand.u32 %v838, 127
        %v840 = vlaneseq
        %v841 = vshrl.u32 %v840, 7
        %v842 = vmul.u32 %v841, 2
        %vm843 = vcmp.ge.s32.totalorder %v839, 64
        %v844 = vsel %vm843, 1, 0
        %v845 = vadd.s32 %v842, %v844
        %v846 = vcvt.f32.s32.to.zero.pseudo %v248
        %v847 = vcvt.f32.s32.to.zero.pseudo %v249
        %v848 = vrot.slane %v846, 1
        %v849 = vrot.slane %v846, 2
        %v850 = vrot.slane %v846, 3
        %v851 = vrot.slane %v846, 4
        %v852 = vrot.slane %v846, 5
        %v853 = vrot.slane %v846, 6
        %v854 = vrot.slane %v846, 7
        %v855 = vrot.slane %v847, 1
        %v856 = vrot.slane %v847, 2
        %v857 = vrot.slane %v847, 3
        %v858 = vrot.slane %v847, 4
        %v859 = vrot.slane %v847, 5
        %v860 = vrot.slane %v847, 6
        %v861 = vrot.slane %v847, 7
        %v862 = vld [vmem:[%s2] sm:$0xff]
        %v863 = vld [vmem:[%s239] sm:$0xff]
        %v864 = vld [vmem:[%s239 + $0x8] sm:$0xff]
        %v865 = vld [vmem:[%s239 + $0x10] sm:$0xff]
        %v866 = vld [vmem:[%s239 + $0x18] sm:$0xff]
        %v867 = vld [vmem:[%s239 + $0x20] sm:$0xff]
        %v868 = vld [vmem:[%s239 + $0x28] sm:$0xff]
        %v869 = vld [vmem:[%s239 + $0x30] sm:$0xff]
        %v870 = vld [vmem:[%s239 + $0x38] sm:$0xff]
        %v871 = vld [vmem:[%s239 + $0x40] sm:$0xff]
        %v872 = vld [vmem:[%s239 + $0x48] sm:$0xff]
        %v873 = vld [vmem:[%s239 + $0x50] sm:$0xff]
        %v874 = vld [vmem:[%s239 + $0x58] sm:$0xff]
        %v875 = vld [vmem:[%s239 + $0x60] sm:$0xff]
        %v876 = vld [vmem:[%s239 + $0x68] sm:$0xff]
        %v877 = vld [vmem:[%s239 + $0x70] sm:$0xff]
        %v878 = vld [vmem:[%s239 + $0x78] sm:$0xff]
        %v880 = vsel %vm266, %v863, 0
        %v883 = vsel %vm266, %v864, 0
        %v886 = vsel %vm266, %v865, 0
        %v889 = vsel %vm266, %v866, 0
        %v892 = vsel %vm266, %v867, 0
        %v895 = vsel %vm266, %v868, 0
        %v898 = vsel %vm266, %v869, 0
        %v901 = vsel %vm266, %v870, 0
        %v904 = vsel %vm266, %v871, 0
        %v907 = vsel %vm266, %v872, 0
        %v910 = vsel %vm266, %v873, 0
        %v913 = vsel %vm266, %v874, 0
        %v916 = vsel %vm266, %v875, 0
        %v919 = vsel %vm266, %v876, 0
        %v922 = vsel %vm266, %v877, 0
        %v925 = vsel %vm266, %v878, 0
        %927 = vmatpush.msra.mxu0 0.0
        %928 = vmatpush.msra.mxu0 0.0
        %929 = vmatpush.msra.mxu0 0.0
        %930 = vmatpush.msra.mxu0 0.0
        %931 = vmatpush.msra.mxu0 0.0
        %932 = vmatpush.msra.mxu0 0.0
        %933 = vmatpush.msra.mxu0 0.0
        %934 = vmatpush.msra.mxu0 0.0
        %935 = vmatpush.msra.mxu0 0.0
        %936 = vmatpush.msra.mxu0 0.0
        %937 = vmatpush.msra.mxu0 0.0
        %938 = vmatpush.msra.mxu0 0.0
        %939 = vmatpush.msra.mxu0 0.0
        %940 = vmatpush.msra.mxu0 0.0
        %941 = vmatpush.msra.mxu0 0.0
        %942 = vmatpush.msra.mxu0 %v862
        %943 = vmatmul.f32.gmra.mxu0 %v880
        %v944 = vpop.f32.mrf.mxu0
        %v945 = vadd.f32 0.0, %v944
        %946 = vmatmul.f32.gmra.mxu0 %v883
        %v947 = vpop.f32.mrf.mxu0
        %v948 = vadd.f32 0.0, %v947
        %949 = vmatmul.f32.gmra.mxu0 %v886
        %v950 = vpop.f32.mrf.mxu0
        %v951 = vadd.f32 0.0, %v950
        %952 = vmatmul.f32.gmra.mxu0 %v889
        %v953 = vpop.f32.mrf.mxu0
        %v954 = vadd.f32 0.0, %v953
        %955 = vmatmul.f32.gmra.mxu0 %v892
        %v956 = vpop.f32.mrf.mxu0
        %v957 = vadd.f32 0.0, %v956
        %958 = vmatmul.f32.gmra.mxu0 %v895
        %v959 = vpop.f32.mrf.mxu0
        %v960 = vadd.f32 0.0, %v959
        %961 = vmatmul.f32.gmra.mxu0 %v898
        %v962 = vpop.f32.mrf.mxu0
        %v963 = vadd.f32 0.0, %v962
        %964 = vmatmul.f32.gmra.mxu0 %v901
        %v965 = vpop.f32.mrf.mxu0
        %v966 = vadd.f32 0.0, %v965
        %967 = vmatmul.f32.gmra.mxu0 %v904
        %v968 = vpop.f32.mrf.mxu0
        %v969 = vadd.f32 0.0, %v968
        %970 = vmatmul.f32.gmra.mxu0 %v907
        %v971 = vpop.f32.mrf.mxu0
        %v972 = vadd.f32 0.0, %v971
        %973 = vmatmul.f32.gmra.mxu0 %v910
        %v974 = vpop.f32.mrf.mxu0
        %v975 = vadd.f32 0.0, %v974
        %976 = vmatmul.f32.gmra.mxu0 %v913
        %v977 = vpop.f32.mrf.mxu0
        %v978 = vadd.f32 0.0, %v977
        %979 = vmatmul.f32.gmra.mxu0 %v916
        %v980 = vpop.f32.mrf.mxu0
        %v981 = vadd.f32 0.0, %v980
        %982 = vmatmul.f32.gmra.mxu0 %v919
        %v983 = vpop.f32.mrf.mxu0
        %v984 = vadd.f32 0.0, %v983
        %985 = vmatmul.f32.gmra.mxu0 %v922
        %v986 = vpop.f32.mrf.mxu0
        %v987 = vadd.f32 0.0, %v986
        %988 = vmatmul.f32.gmra.mxu0 %v925
        %v989 = vpop.f32.mrf.mxu0
        %v990 = vadd.f32 0.0, %v989
        %991 = vdwg.mxu0
        %v994 = vrot.slane %v833, 1
        %v995 = vrot.slane %v833, 2
        %v996 = vrot.slane %v833, 3
        %v997 = vrot.slane %v833, 4
        %v998 = vrot.slane %v833, 5
        %v999 = vrot.slane %v833, 6
        %v1000 = vrot.slane %v833, 7
        %v1001 = vrot.slane %v836, 1
        %v1002 = vrot.slane %v836, 2
        %v1003 = vrot.slane %v836, 3
        %v1004 = vrot.slane %v836, 4
        %v1005 = vrot.slane %v836, 5
        %v1006 = vrot.slane %v836, 6
        %v1007 = vrot.slane %v836, 7
        %v1008 = vperm.slane %v833, 0
        %v1009 = vperm.slane %v994, 0
        %v1010 = vperm.slane %v995, 0
        %v1011 = vperm.slane %v996, 0
        %v1012 = vperm.slane %v997, 0
        %v1013 = vperm.slane %v998, 0
        %v1014 = vperm.slane %v999, 0
        %v1015 = vperm.slane %v1000, 0
        %v1016 = vperm.slane %v836, 0
        %v1017 = vperm.slane %v1001, 0
        %v1018 = vperm.slane %v1002, 0
        %v1019 = vperm.slane %v1003, 0
        %v1020 = vperm.slane %v1004, 0
        %v1021 = vperm.slane %v1005, 0
        %v1022 = vperm.slane %v1006, 0
        %v1023 = vperm.slane %v1007, 0
        %v1040 = vsub.f32 %v945, %v1008
        %v1041 = vsub.f32 %v948, %v1009
        %v1042 = vsub.f32 %v951, %v1010
        %v1043 = vsub.f32 %v954, %v1011
        %v1044 = vsub.f32 %v957, %v1012
        %v1045 = vsub.f32 %v960, %v1013
        %v1046 = vsub.f32 %v963, %v1014
        %v1047 = vsub.f32 %v966, %v1015
        %v1048 = vsub.f32 %v969, %v1016
        %v1049 = vsub.f32 %v972, %v1017
        %v1050 = vsub.f32 %v975, %v1018
        %v1051 = vsub.f32 %v978, %v1019
        %v1052 = vsub.f32 %v981, %v1020
        %v1053 = vsub.f32 %v984, %v1021
        %v1054 = vsub.f32 %v987, %v1022
        %v1055 = vsub.f32 %v990, %v1023
        %v1056 = vperm.slane %v846, 0
        %v1057 = vperm.slane %v848, 0
        %v1058 = vperm.slane %v849, 0
        %v1059 = vperm.slane %v850, 0
        %v1060 = vperm.slane %v851, 0
        %v1061 = vperm.slane %v852, 0
        %v1062 = vperm.slane %v853, 0
        %v1063 = vperm.slane %v854, 0
        %v1064 = vperm.slane %v847, 0
        %v1065 = vperm.slane %v855, 0
        %v1066 = vperm.slane %v856, 0
        %v1067 = vperm.slane %v857, 0
        %v1068 = vperm.slane %v858, 0
        %v1069 = vperm.slane %v859, 0
        %v1070 = vperm.slane %v860, 0
        %v1071 = vperm.slane %v861, 0
        %1072 = vset.pattern.permute.xlu0 0
        %1073 = vperm.xlu0 %1072, %v1056
        %v1074 = vpop.permute.xlu0 %1073
        %1075 = vset.pattern.permute.xlu0 0
        %1076 = vperm.xlu0 %1075, %v1057
        %v1077 = vpop.permute.xlu0 %1076
        %1078 = vset.pattern.permute.xlu0 0
        %1079 = vperm.xlu0 %1078, %v1058
        %v1080 = vpop.permute.xlu0 %1079
        %1081 = vset.pattern.permute.xlu0 0
        %1082 = vperm.xlu0 %1081, %v1059
        %v1083 = vpop.permute.xlu0 %1082
        %1084 = vset.pattern.permute.xlu0 0
        %1085 = vperm.xlu0 %1084, %v1060
        %v1086 = vpop.permute.xlu0 %1085
        %1087 = vset.pattern.permute.xlu0 0
        %1088 = vperm.xlu0 %1087, %v1061
        %v1089 = vpop.permute.xlu0 %1088
        %1090 = vset.pattern.permute.xlu0 0
        %1091 = vperm.xlu0 %1090, %v1062
        %v1092 = vpop.permute.xlu0 %1091
        %1093 = vset.pattern.permute.xlu0 0
        %1094 = vperm.xlu0 %1093, %v1063
        %v1095 = vpop.permute.xlu0 %1094
        %1096 = vset.pattern.permute.xlu0 0
        %1097 = vperm.xlu0 %1096, %v1064
        %v1098 = vpop.permute.xlu0 %1097
        %1099 = vset.pattern.permute.xlu0 0
        %1100 = vperm.xlu0 %1099, %v1065
        %v1101 = vpop.permute.xlu0 %1100
        %1102 = vset.pattern.permute.xlu0 0
        %1103 = vperm.xlu0 %1102, %v1066
        %v1104 = vpop.permute.xlu0 %1103
        %1105 = vset.pattern.permute.xlu0 0
        %1106 = vperm.xlu0 %1105, %v1067
        %v1107 = vpop.permute.xlu0 %1106
        %1108 = vset.pattern.permute.xlu0 0
        %1109 = vperm.xlu0 %1108, %v1068
        %v1110 = vpop.permute.xlu0 %1109
        %1111 = vset.pattern.permute.xlu0 0
        %1112 = vperm.xlu0 %1111, %v1069
        %v1113 = vpop.permute.xlu0 %1112
        %1114 = vset.pattern.permute.xlu0 0
        %1115 = vperm.xlu0 %1114, %v1070
        %v1116 = vpop.permute.xlu0 %1115
        %1117 = vset.pattern.permute.xlu0 0
        %1118 = vperm.xlu0 %1117, %v1071
        %v1119 = vpop.permute.xlu0 %1118
        %vm1120 = vcmp.lt.s32.totalorder %v845, %v1074
        %vm1121 = vcmp.lt.s32.totalorder %v845, %v1077
        %vm1122 = vcmp.lt.s32.totalorder %v845, %v1080
        %vm1123 = vcmp.lt.s32.totalorder %v845, %v1083
        %vm1124 = vcmp.lt.s32.totalorder %v845, %v1086
        %vm1125 = vcmp.lt.s32.totalorder %v845, %v1089
        %vm1126 = vcmp.lt.s32.totalorder %v845, %v1092
        %vm1127 = vcmp.lt.s32.totalorder %v845, %v1095
        %vm1128 = vcmp.lt.s32.totalorder %v845, %v1098
        %vm1129 = vcmp.lt.s32.totalorder %v845, %v1101
        %vm1130 = vcmp.lt.s32.totalorder %v845, %v1104
        %vm1131 = vcmp.lt.s32.totalorder %v845, %v1107
        %vm1132 = vcmp.lt.s32.totalorder %v845, %v1110
        %vm1133 = vcmp.lt.s32.totalorder %v845, %v1113
        %vm1134 = vcmp.lt.s32.totalorder %v845, %v1116
        %vm1135 = vcmp.lt.s32.totalorder %v845, %v1119
        %v1136 = vsel %vm1120, %v1040, 0.0
        %v1137 = vsel %vm1121, %v1041, 0.0
        %v1138 = vsel %vm1122, %v1042, 0.0
        %v1139 = vsel %vm1123, %v1043, 0.0
        %v1140 = vsel %vm1124, %v1044, 0.0
        %v1141 = vsel %vm1125, %v1045, 0.0
        %v1142 = vsel %vm1126, %v1046, 0.0
        %v1143 = vsel %vm1127, %v1047, 0.0
        %v1144 = vsel %vm1128, %v1048, 0.0
        %v1145 = vsel %vm1129, %v1049, 0.0
        %v1146 = vsel %vm1130, %v1050, 0.0
        %v1147 = vsel %vm1131, %v1051, 0.0
        %v1148 = vsel %vm1132, %v1052, 0.0
        %v1149 = vsel %vm1133, %v1053, 0.0
        %v1150 = vsel %vm1134, %v1054, 0.0
        %v1151 = vsel %vm1135, %v1055, 0.0
        %v1152 = vrot.slane %v1136, 4
        %v1153 = vmax.f32 %v1136, %v1152
        %v1154 = vrot.slane %v1153, 2
        %v1155 = vmax.f32 %v1153, %v1154
        %v1156 = vrot.slane %v1155, 1
        %v1157 = vmax.f32 %v1155, %v1156
        %v1158 = vrot.slane %v1137, 4
        %v1159 = vmax.f32 %v1137, %v1158
        %v1160 = vrot.slane %v1159, 2
        %v1161 = vmax.f32 %v1159, %v1160
        %v1162 = vrot.slane %v1161, 1
        %v1163 = vmax.f32 %v1161, %v1162
        %v1164 = vrot.slane %v1138, 4
        %v1165 = vmax.f32 %v1138, %v1164
        %v1166 = vrot.slane %v1165, 2
        %v1167 = vmax.f32 %v1165, %v1166
        %v1168 = vrot.slane %v1167, 1
        %v1169 = vmax.f32 %v1167, %v1168
        %v1170 = vrot.slane %v1139, 4
        %v1171 = vmax.f32 %v1139, %v1170
        %v1172 = vrot.slane %v1171, 2
        %v1173 = vmax.f32 %v1171, %v1172
        %v1174 = vrot.slane %v1173, 1
        %v1175 = vmax.f32 %v1173, %v1174
        %v1176 = vrot.slane %v1140, 4
        %v1177 = vmax.f32 %v1140, %v1176
        %v1178 = vrot.slane %v1177, 2
        %v1179 = vmax.f32 %v1177, %v1178
        %v1180 = vrot.slane %v1179, 1
        %v1181 = vmax.f32 %v1179, %v1180
        %v1182 = vrot.slane %v1141, 4
        %v1183 = vmax.f32 %v1141, %v1182
        %v1184 = vrot.slane %v1183, 2
        %v1185 = vmax.f32 %v1183, %v1184
        %v1186 = vrot.slane %v1185, 1
        %v1187 = vmax.f32 %v1185, %v1186
        %v1188 = vrot.slane %v1142, 4
        %v1189 = vmax.f32 %v1142, %v1188
        %v1190 = vrot.slane %v1189, 2
        %v1191 = vmax.f32 %v1189, %v1190
        %v1192 = vrot.slane %v1191, 1
        %v1193 = vmax.f32 %v1191, %v1192
        %v1194 = vrot.slane %v1143, 4
        %v1195 = vmax.f32 %v1143, %v1194
        %v1196 = vrot.slane %v1195, 2
        %v1197 = vmax.f32 %v1195, %v1196
        %v1198 = vrot.slane %v1197, 1
        %v1199 = vmax.f32 %v1197, %v1198
        %v1200 = vrot.slane %v1144, 4
        %v1201 = vmax.f32 %v1144, %v1200
        %v1202 = vrot.slane %v1201, 2
        %v1203 = vmax.f32 %v1201, %v1202
        %v1204 = vrot.slane %v1203, 1
        %v1205 = vmax.f32 %v1203, %v1204
        %v1206 = vrot.slane %v1145, 4
        %v1207 = vmax.f32 %v1145, %v1206
        %v1208 = vrot.slane %v1207, 2
        %v1209 = vmax.f32 %v1207, %v1208
        %v1210 = vrot.slane %v1209, 1
        %v1211 = vmax.f32 %v1209, %v1210
        %v1212 = vrot.slane %v1146, 4
        %v1213 = vmax.f32 %v1146, %v1212
        %v1214 = vrot.slane %v1213, 2
        %v1215 = vmax.f32 %v1213, %v1214
        %v1216 = vrot.slane %v1215, 1
        %v1217 = vmax.f32 %v1215, %v1216
        %v1218 = vrot.slane %v1147, 4
        %v1219 = vmax.f32 %v1147, %v1218
        %v1220 = vrot.slane %v1219, 2
        %v1221 = vmax.f32 %v1219, %v1220
        %v1222 = vrot.slane %v1221, 1
        %v1223 = vmax.f32 %v1221, %v1222
        %v1224 = vrot.slane %v1148, 4
        %v1225 = vmax.f32 %v1148, %v1224
        %v1226 = vrot.slane %v1225, 2
        %v1227 = vmax.f32 %v1225, %v1226
        %v1228 = vrot.slane %v1227, 1
        %v1229 = vmax.f32 %v1227, %v1228
        %v1230 = vrot.slane %v1149, 4
        %v1231 = vmax.f32 %v1149, %v1230
        %v1232 = vrot.slane %v1231, 2
        %v1233 = vmax.f32 %v1231, %v1232
        %v1234 = vrot.slane %v1233, 1
        %v1235 = vmax.f32 %v1233, %v1234
        %v1236 = vrot.slane %v1150, 4
        %v1237 = vmax.f32 %v1150, %v1236
        %v1238 = vrot.slane %v1237, 2
        %v1239 = vmax.f32 %v1237, %v1238
        %v1240 = vrot.slane %v1239, 1
        %v1241 = vmax.f32 %v1239, %v1240
        %v1242 = vrot.slane %v1151, 4
        %v1243 = vmax.f32 %v1151, %v1242
        %v1244 = vrot.slane %v1243, 2
        %v1245 = vmax.f32 %v1243, %v1244
        %v1246 = vrot.slane %v1245, 1
        %v1247 = vmax.f32 %v1245, %v1246
        %v1248 = vrot.slane %v1136, 4
        %v1249 = vmin.f32 %v1136, %v1248
        %v1250 = vrot.slane %v1249, 2
        %v1251 = vmin.f32 %v1249, %v1250
        %v1252 = vrot.slane %v1251, 1
        %v1253 = vmin.f32 %v1251, %v1252
        %v1254 = vrot.slane %v1137, 4
        %v1255 = vmin.f32 %v1137, %v1254
        %v1256 = vrot.slane %v1255, 2
        %v1257 = vmin.f32 %v1255, %v1256
        %v1258 = vrot.slane %v1257, 1
        %v1259 = vmin.f32 %v1257, %v1258
        %v1260 = vrot.slane %v1138, 4
        %v1261 = vmin.f32 %v1138, %v1260
        %v1262 = vrot.slane %v1261, 2
        %v1263 = vmin.f32 %v1261, %v1262
        %v1264 = vrot.slane %v1263, 1
        %v1265 = vmin.f32 %v1263, %v1264
        %v1266 = vrot.slane %v1139, 4
        %v1267 = vmin.f32 %v1139, %v1266
        %v1268 = vrot.slane %v1267, 2
        %v1269 = vmin.f32 %v1267, %v1268
        %v1270 = vrot.slane %v1269, 1
        %v1271 = vmin.f32 %v1269, %v1270
        %v1272 = vrot.slane %v1140, 4
        %v1273 = vmin.f32 %v1140, %v1272
        %v1274 = vrot.slane %v1273, 2
        %v1275 = vmin.f32 %v1273, %v1274
        %v1276 = vrot.slane %v1275, 1
        %v1277 = vmin.f32 %v1275, %v1276
        %v1278 = vrot.slane %v1141, 4
        %v1279 = vmin.f32 %v1141, %v1278
        %v1280 = vrot.slane %v1279, 2
        %v1281 = vmin.f32 %v1279, %v1280
        %v1282 = vrot.slane %v1281, 1
        %v1283 = vmin.f32 %v1281, %v1282
        %v1284 = vrot.slane %v1142, 4
        %v1285 = vmin.f32 %v1142, %v1284
        %v1286 = vrot.slane %v1285, 2
        %v1287 = vmin.f32 %v1285, %v1286
        %v1288 = vrot.slane %v1287, 1
        %v1289 = vmin.f32 %v1287, %v1288
        %v1290 = vrot.slane %v1143, 4
        %v1291 = vmin.f32 %v1143, %v1290
        %v1292 = vrot.slane %v1291, 2
        %v1293 = vmin.f32 %v1291, %v1292
        %v1294 = vrot.slane %v1293, 1
        %v1295 = vmin.f32 %v1293, %v1294
        %v1296 = vrot.slane %v1144, 4
        %v1297 = vmin.f32 %v1144, %v1296
        %v1298 = vrot.slane %v1297, 2
        %v1299 = vmin.f32 %v1297, %v1298
        %v1300 = vrot.slane %v1299, 1
        %v1301 = vmin.f32 %v1299, %v1300
        %v1302 = vrot.slane %v1145, 4
        %v1303 = vmin.f32 %v1145, %v1302
        %v1304 = vrot.slane %v1303, 2
        %v1305 = vmin.f32 %v1303, %v1304
        %v1306 = vrot.slane %v1305, 1
        %v1307 = vmin.f32 %v1305, %v1306
        %v1308 = vrot.slane %v1146, 4
        %v1309 = vmin.f32 %v1146, %v1308
        %v1310 = vrot.slane %v1309, 2
        %v1311 = vmin.f32 %v1309, %v1310
        %v1312 = vrot.slane %v1311, 1
        %v1313 = vmin.f32 %v1311, %v1312
        %v1314 = vrot.slane %v1147, 4
        %v1315 = vmin.f32 %v1147, %v1314
        %v1316 = vrot.slane %v1315, 2
        %v1317 = vmin.f32 %v1315, %v1316
        %v1318 = vrot.slane %v1317, 1
        %v1319 = vmin.f32 %v1317, %v1318
        %v1320 = vrot.slane %v1148, 4
        %v1321 = vmin.f32 %v1148, %v1320
        %v1322 = vrot.slane %v1321, 2
        %v1323 = vmin.f32 %v1321, %v1322
        %v1324 = vrot.slane %v1323, 1
        %v1325 = vmin.f32 %v1323, %v1324
        %v1326 = vrot.slane %v1149, 4
        %v1327 = vmin.f32 %v1149, %v1326
        %v1328 = vrot.slane %v1327, 2
        %v1329 = vmin.f32 %v1327, %v1328
        %v1330 = vrot.slane %v1329, 1
        %v1331 = vmin.f32 %v1329, %v1330
        %v1332 = vrot.slane %v1150, 4
        %v1333 = vmin.f32 %v1150, %v1332
        %v1334 = vrot.slane %v1333, 2
        %v1335 = vmin.f32 %v1333, %v1334
        %v1336 = vrot.slane %v1335, 1
        %v1337 = vmin.f32 %v1335, %v1336
        %v1338 = vrot.slane %v1151, 4
        %v1339 = vmin.f32 %v1151, %v1338
        %v1340 = vrot.slane %v1339, 2
        %v1341 = vmin.f32 %v1339, %v1340
        %v1342 = vrot.slane %v1341, 1
        %v1343 = vmin.f32 %v1341, %v1342
        %v1360 = vsel %vm756, %v1163, %v1157
        %v1361 = vsel %vm759, %v1169, %v1360
        %v1362 = vsel %vm762, %v1175, %v1361
        %v1363 = vsel %vm765, %v1181, %v1362
        %v1364 = vsel %vm768, %v1187, %v1363
        %v1365 = vsel %vm771, %v1193, %v1364
        %v1366 = vsel %vm774, %v1199, %v1365
        %v1367 = vsel %vm756, %v1211, %v1205
        %v1368 = vsel %vm759, %v1217, %v1367
        %v1369 = vsel %vm762, %v1223, %v1368
        %v1370 = vsel %vm765, %v1229, %v1369
        %v1371 = vsel %vm768, %v1235, %v1370
        %v1372 = vsel %vm771, %v1241, %v1371
        %v1373 = vsel %vm774, %v1247, %v1372
        %1376 = vrot.lane.b32.xlu0 %v1366, 64
        %v1377 = vpop.permute.xlu0 %1376
        %1378 = vrot.lane.b32.xlu0 %v1373, 64
        %v1379 = vpop.permute.xlu0 %1378
        %v1382 = vrot.slane %v1377, 1
        %v1383 = vrot.slane %v1377, 2
        %v1384 = vrot.slane %v1377, 3
        %v1385 = vrot.slane %v1377, 4
        %v1386 = vrot.slane %v1377, 5
        %v1387 = vrot.slane %v1377, 6
        %v1388 = vrot.slane %v1377, 7
        %v1389 = vrot.slane %v1379, 1
        %v1390 = vrot.slane %v1379, 2
        %v1391 = vrot.slane %v1379, 3
        %v1392 = vrot.slane %v1379, 4
        %v1393 = vrot.slane %v1379, 5
        %v1394 = vrot.slane %v1379, 6
        %v1395 = vrot.slane %v1379, 7
        %v1412 = vmax.f32 %v1157, %v1377
        %v1413 = vmax.f32 %v1163, %v1382
        %v1414 = vmax.f32 %v1169, %v1383
        %v1415 = vmax.f32 %v1175, %v1384
        %v1416 = vmax.f32 %v1181, %v1385
        %v1417 = vmax.f32 %v1187, %v1386
        %v1418 = vmax.f32 %v1193, %v1387
        %v1419 = vmax.f32 %v1199, %v1388
        %v1420 = vmax.f32 %v1205, %v1379
        %v1421 = vmax.f32 %v1211, %v1389
        %v1422 = vmax.f32 %v1217, %v1390
        %v1423 = vmax.f32 %v1223, %v1391
        %v1424 = vmax.f32 %v1229, %v1392
        %v1425 = vmax.f32 %v1235, %v1393
        %v1426 = vmax.f32 %v1241, %v1394
        %v1427 = vmax.f32 %v1247, %v1395
        %v1444 = vsel %vm756, %v1259, %v1253
        %v1445 = vsel %vm759, %v1265, %v1444
        %v1446 = vsel %vm762, %v1271, %v1445
        %v1447 = vsel %vm765, %v1277, %v1446
        %v1448 = vsel %vm768, %v1283, %v1447
        %v1449 = vsel %vm771, %v1289, %v1448
        %v1450 = vsel %vm774, %v1295, %v1449
        %v1451 = vsel %vm756, %v1307, %v1301
        %v1452 = vsel %vm759, %v1313, %v1451
        %v1453 = vsel %vm762, %v1319, %v1452
        %v1454 = vsel %vm765, %v1325, %v1453
        %v1455 = vsel %vm768, %v1331, %v1454
        %v1456 = vsel %vm771, %v1337, %v1455
        %v1457 = vsel %vm774, %v1343, %v1456
        %1460 = vrot.lane.b32.xlu0 %v1450, 64
        %v1461 = vpop.permute.xlu0 %1460
        %1462 = vrot.lane.b32.xlu0 %v1457, 64
        %v1463 = vpop.permute.xlu0 %1462
        %v1466 = vrot.slane %v1461, 1
        %v1467 = vrot.slane %v1461, 2
        %v1468 = vrot.slane %v1461, 3
        %v1469 = vrot.slane %v1461, 4
        %v1470 = vrot.slane %v1461, 5
        %v1471 = vrot.slane %v1461, 6
        %v1472 = vrot.slane %v1461, 7
        %v1473 = vrot.slane %v1463, 1
        %v1474 = vrot.slane %v1463, 2
        %v1475 = vrot.slane %v1463, 3
        %v1476 = vrot.slane %v1463, 4
        %v1477 = vrot.slane %v1463, 5
        %v1478 = vrot.slane %v1463, 6
        %v1479 = vrot.slane %v1463, 7
        %v1496 = vmin.f32 %v1253, %v1461
        %v1497 = vmin.f32 %v1259, %v1466
        %v1498 = vmin.f32 %v1265, %v1467
        %v1499 = vmin.f32 %v1271, %v1468
        %v1500 = vmin.f32 %v1277, %v1469
        %v1501 = vmin.f32 %v1283, %v1470
        %v1502 = vmin.f32 %v1289, %v1471
        %v1503 = vmin.f32 %v1295, %v1472
        %v1504 = vmin.f32 %v1301, %v1463
        %v1505 = vmin.f32 %v1307, %v1473
        %v1506 = vmin.f32 %v1313, %v1474
        %v1507 = vmin.f32 %v1319, %v1475
        %v1508 = vmin.f32 %v1325, %v1476
        %v1509 = vmin.f32 %v1331, %v1477
        %v1510 = vmin.f32 %v1337, %v1478
        %v1511 = vmin.f32 %v1343, %v1479
        %v1512 = vld [vmem:[%s4] sm:$0x1]
        %v1514 = vperm.slane %v1512, 0
        %v1516 = vadd.f32 %v1412, %v1514
        %v1517 = vadd.f32 %v1413, %v1514
        %v1518 = vadd.f32 %v1414, %v1514
        %v1519 = vadd.f32 %v1415, %v1514
        %v1520 = vadd.f32 %v1416, %v1514
        %v1521 = vadd.f32 %v1417, %v1514
        %v1522 = vadd.f32 %v1418, %v1514
        %v1523 = vadd.f32 %v1419, %v1514
        %v1524 = vadd.f32 %v1420, %v1514
        %v1525 = vadd.f32 %v1421, %v1514
        %v1526 = vadd.f32 %v1422, %v1514
        %v1527 = vadd.f32 %v1423, %v1514
        %v1528 = vadd.f32 %v1424, %v1514
        %v1529 = vadd.f32 %v1425, %v1514
        %v1530 = vadd.f32 %v1426, %v1514
        %v1531 = vadd.f32 %v1427, %v1514
        %v1532 = vadd.f32 %v1496, %v1514
        %v1533 = vadd.f32 %v1497, %v1514
        %v1534 = vadd.f32 %v1498, %v1514
        %v1535 = vadd.f32 %v1499, %v1514
        %v1536 = vadd.f32 %v1500, %v1514
        %v1537 = vadd.f32 %v1501, %v1514
        %v1538 = vadd.f32 %v1502, %v1514
        %v1539 = vadd.f32 %v1503, %v1514
        %v1540 = vadd.f32 %v1504, %v1514
        %v1541 = vadd.f32 %v1505, %v1514
        %v1542 = vadd.f32 %v1506, %v1514
        %v1543 = vadd.f32 %v1507, %v1514
        %v1544 = vadd.f32 %v1508, %v1514
        %v1545 = vadd.f32 %v1509, %v1514
        %v1546 = vadd.f32 %v1510, %v1514
        %v1547 = vadd.f32 %v1511, %v1514
        %v1548 = vmul.f32 %v1516, 0.5
        %v1549 = vmul.f32 %v1517, 0.5
        %v1550 = vmul.f32 %v1518, 0.5
        %v1551 = vmul.f32 %v1519, 0.5
        %v1552 = vmul.f32 %v1520, 0.5
        %v1553 = vmul.f32 %v1521, 0.5
        %v1554 = vmul.f32 %v1522, 0.5
        %v1555 = vmul.f32 %v1523, 0.5
        %v1556 = vmul.f32 %v1524, 0.5
        %v1557 = vmul.f32 %v1525, 0.5
        %v1558 = vmul.f32 %v1526, 0.5
        %v1559 = vmul.f32 %v1527, 0.5
        %v1560 = vmul.f32 %v1528, 0.5
        %v1561 = vmul.f32 %v1529, 0.5
        %v1562 = vmul.f32 %v1530, 0.5
        %v1563 = vmul.f32 %v1531, 0.5
        %v1564 = vmul.f32 %v1516, 0.70710677
        %v1565 = vmul.f32 %v1517, 0.70710677
        %v1566 = vmul.f32 %v1518, 0.70710677
        %v1567 = vmul.f32 %v1519, 0.70710677
        %v1568 = vmul.f32 %v1520, 0.70710677
        %v1569 = vmul.f32 %v1521, 0.70710677
        %v1570 = vmul.f32 %v1522, 0.70710677
        %v1571 = vmul.f32 %v1523, 0.70710677
        %v1572 = vmul.f32 %v1524, 0.70710677
        %v1573 = vmul.f32 %v1525, 0.70710677
        %v1574 = vmul.f32 %v1526, 0.70710677
        %v1575 = vmul.f32 %v1527, 0.70710677
        %v1576 = vmul.f32 %v1528, 0.70710677
        %v1577 = vmul.f32 %v1529, 0.70710677
        %v1578 = vmul.f32 %v1530, 0.70710677
        %v1579 = vmul.f32 %v1531, 0.70710677
        %v1580 = vmul.f32 %v1564, %v1564
        %v1581 = vmin.f32 16.0, %v1580
        %v1582 = vmul.f32 %v1581, 2.1237322e-06
        %v1583 = vadd.f32 %v1582, 0.00028619796
        %v1584 = vmul.f32 %v1581, %v1583
        %v1585 = vadd.f32 %v1584, 0.0036580483
        %v1586 = vmul.f32 %v1581, %v1585
        %v1587 = vadd.f32 %v1586, 0.05243302
        %v1588 = vmul.f32 %v1581, %v1587
        %v1589 = vadd.f32 %v1588, 0.18741608
        %v1590 = vmul.f32 %v1581, %v1589
        %v1591 = vadd.f32 %v1590, 1.1283791
        %v1592 = vmul.f32 %v1564, %v1591
        %v1593 = vmul.f32 %v1581, 3.8918573e-05
        %v1594 = vadd.f32 %v1593, 0.001143296
        %v1595 = vmul.f32 %v1581, %v1594
        %v1596 = vadd.f32 %v1595, 0.014752088
        %v1597 = vmul.f32 %v1581, %v1596
        %v1598 = vadd.f32 %v1597, 0.112945676
        %v1599 = vmul.f32 %v1581, %v1598
        %v1600 = vadd.f32 %v1599, 0.4994258
        %v1601 = vmul.f32 %v1581, %v1600
        %v1602 = vadd.f32 %v1601, 1.0
        %v1603 = vrcp.pop %v1602
        %v1604 = vmul.f32 %v1602, %v1603
        %v1605 = vsub.f32 1.0, %v1604
        %v1606 = vmul.f32 %v1603, %v1605
        %v1607 = vadd.f32 %v1603, %v1606
        %vm1608 = vweird.f32 %v1602
        %vm1609 = vweird.f32 %v1603
        %vm1610 = vmor %vm1608, %vm1609
        %v1611 = vsel %vm1610, %v1603, %v1607
        %v1612 = vand.u32 2147483647, %v1602
        %vm1613 = vcmp.eq.f32.partialorder %v1612, 8.507059e+37
        %v1614 = vand.u32 %v1602, 2147483648
        %v1615 = vor.u32 1.1754944e-38, %v1614
        %v1616 = vsel %vm1613, %v1615, %v1611
        %v1617 = vmul.f32 %v1592, %v1616
        %v1618 = vmin.f32 %v1617, 1.0
        %v1619 = vmax.f32 %v1618, -1.0
        %v1620 = vmul.f32 %v1565, %v1565
        %v1621 = vmin.f32 16.0, %v1620
        %v1622 = vmul.f32 %v1621, 2.1237322e-06
        %v1623 = vadd.f32 %v1622, 0.00028619796
        %v1624 = vmul.f32 %v1621, %v1623
        %v1625 = vadd.f32 %v1624, 0.0036580483
        %v1626 = vmul.f32 %v1621, %v1625
        %v1627 = vadd.f32 %v1626, 0.05243302
        %v1628 = vmul.f32 %v1621, %v1627
        %v1629 = vadd.f32 %v1628, 0.18741608
        %v1630 = vmul.f32 %v1621, %v1629
        %v1631 = vadd.f32 %v1630, 1.1283791
        %v1632 = vmul.f32 %v1565, %v1631
        %v1633 = vmul.f32 %v1621, 3.8918573e-05
        %v1634 = vadd.f32 %v1633, 0.001143296
        %v1635 = vmul.f32 %v1621, %v1634
        %v1636 = vadd.f32 %v1635, 0.014752088
        %v1637 = vmul.f32 %v1621, %v1636
        %v1638 = vadd.f32 %v1637, 0.112945676
        %v1639 = vmul.f32 %v1621, %v1638
        %v1640 = vadd.f32 %v1639, 0.4994258
        %v1641 = vmul.f32 %v1621, %v1640
        %v1642 = vadd.f32 %v1641, 1.0
        %v1643 = vrcp.pop %v1642
        %v1644 = vmul.f32 %v1642, %v1643
        %v1645 = vsub.f32 1.0, %v1644
        %v1646 = vmul.f32 %v1643, %v1645
        %v1647 = vadd.f32 %v1643, %v1646
        %vm1648 = vweird.f32 %v1642
        %vm1649 = vweird.f32 %v1643
        %vm1650 = vmor %vm1648, %vm1649
        %v1651 = vsel %vm1650, %v1643, %v1647
        %v1652 = vand.u32 2147483647, %v1642
        %vm1653 = vcmp.eq.f32.partialorder %v1652, 8.507059e+37
        %v1654 = vand.u32 %v1642, 2147483648
        %v1655 = vor.u32 1.1754944e-38, %v1654
        %v1656 = vsel %vm1653, %v1655, %v1651
        %v1657 = vmul.f32 %v1632, %v1656
        %v1658 = vmin.f32 %v1657, 1.0
        %v1659 = vmax.f32 %v1658, -1.0
        %v1660 = vmul.f32 %v1566, %v1566
        %v1661 = vmin.f32 16.0, %v1660
        %v1662 = vmul.f32 %v1661, 2.1237322e-06
        %v1663 = vadd.f32 %v1662, 0.00028619796
        %v1664 = vmul.f32 %v1661, %v1663
        %v1665 = vadd.f32 %v1664, 0.0036580483
        %v1666 = vmul.f32 %v1661, %v1665
        %v1667 = vadd.f32 %v1666, 0.05243302
        %v1668 = vmul.f32 %v1661, %v1667
        %v1669 = vadd.f32 %v1668, 0.18741608
        %v1670 = vmul.f32 %v1661, %v1669
        %v1671 = vadd.f32 %v1670, 1.1283791
        %v1672 = vmul.f32 %v1566, %v1671
        %v1673 = vmul.f32 %v1661, 3.8918573e-05
        %v1674 = vadd.f32 %v1673, 0.001143296
        %v1675 = vmul.f32 %v1661, %v1674
        %v1676 = vadd.f32 %v1675, 0.014752088
        %v1677 = vmul.f32 %v1661, %v1676
        %v1678 = vadd.f32 %v1677, 0.112945676
        %v1679 = vmul.f32 %v1661, %v1678
        %v1680 = vadd.f32 %v1679, 0.4994258
        %v1681 = vmul.f32 %v1661, %v1680
        %v1682 = vadd.f32 %v1681, 1.0
        %v1683 = vrcp.pop %v1682
        %v1684 = vmul.f32 %v1682, %v1683
        %v1685 = vsub.f32 1.0, %v1684
        %v1686 = vmul.f32 %v1683, %v1685
        %v1687 = vadd.f32 %v1683, %v1686
        %vm1688 = vweird.f32 %v1682
        %vm1689 = vweird.f32 %v1683
        %vm1690 = vmor %vm1688, %vm1689
        %v1691 = vsel %vm1690, %v1683, %v1687
        %v1692 = vand.u32 2147483647, %v1682
        %vm1693 = vcmp.eq.f32.partialorder %v1692, 8.507059e+37
        %v1694 = vand.u32 %v1682, 2147483648
        %v1695 = vor.u32 1.1754944e-38, %v1694
        %v1696 = vsel %vm1693, %v1695, %v1691
        %v1697 = vmul.f32 %v1672, %v1696
        %v1698 = vmin.f32 %v1697, 1.0
        %v1699 = vmax.f32 %v1698, -1.0
        %v1700 = vmul.f32 %v1567, %v1567
        %v1701 = vmin.f32 16.0, %v1700
        %v1702 = vmul.f32 %v1701, 2.1237322e-06
        %v1703 = vadd.f32 %v1702, 0.00028619796
        %v1704 = vmul.f32 %v1701, %v1703
        %v1705 = vadd.f32 %v1704, 0.0036580483
        %v1706 = vmul.f32 %v1701, %v1705
        %v1707 = vadd.f32 %v1706, 0.05243302
        %v1708 = vmul.f32 %v1701, %v1707
        %v1709 = vadd.f32 %v1708, 0.18741608
        %v1710 = vmul.f32 %v1701, %v1709
        %v1711 = vadd.f32 %v1710, 1.1283791
        %v1712 = vmul.f32 %v1567, %v1711
        %v1713 = vmul.f32 %v1701, 3.8918573e-05
        %v1714 = vadd.f32 %v1713, 0.001143296
        %v1715 = vmul.f32 %v1701, %v1714
        %v1716 = vadd.f32 %v1715, 0.014752088
        %v1717 = vmul.f32 %v1701, %v1716
        %v1718 = vadd.f32 %v1717, 0.112945676
        %v1719 = vmul.f32 %v1701, %v1718
        %v1720 = vadd.f32 %v1719, 0.4994258
        %v1721 = vmul.f32 %v1701, %v1720
        %v1722 = vadd.f32 %v1721, 1.0
        %v1723 = vrcp.pop %v1722
        %v1724 = vmul.f32 %v1722, %v1723
        %v1725 = vsub.f32 1.0, %v1724
        %v1726 = vmul.f32 %v1723, %v1725
        %v1727 = vadd.f32 %v1723, %v1726
        %vm1728 = vweird.f32 %v1722
        %vm1729 = vweird.f32 %v1723
        %vm1730 = vmor %vm1728, %vm1729
        %v1731 = vsel %vm1730, %v1723, %v1727
        %v1732 = vand.u32 2147483647, %v1722
        %vm1733 = vcmp.eq.f32.partialorder %v1732, 8.507059e+37
        %v1734 = vand.u32 %v1722, 2147483648
        %v1735 = vor.u32 1.1754944e-38, %v1734
        %v1736 = vsel %vm1733, %v1735, %v1731
        %v1737 = vmul.f32 %v1712, %v1736
        %v1738 = vmin.f32 %v1737, 1.0
        %v1739 = vmax.f32 %v1738, -1.0
        %v1740 = vmul.f32 %v1568, %v1568
        %v1741 = vmin.f32 16.0, %v1740
        %v1742 = vmul.f32 %v1741, 2.1237322e-06
        %v1743 = vadd.f32 %v1742, 0.00028619796
        %v1744 = vmul.f32 %v1741, %v1743
        %v1745 = vadd.f32 %v1744, 0.0036580483
        %v1746 = vmul.f32 %v1741, %v1745
        %v1747 = vadd.f32 %v1746, 0.05243302
        %v1748 = vmul.f32 %v1741, %v1747
        %v1749 = vadd.f32 %v1748, 0.18741608
        %v1750 = vmul.f32 %v1741, %v1749
        %v1751 = vadd.f32 %v1750, 1.1283791
        %v1752 = vmul.f32 %v1568, %v1751
        %v1753 = vmul.f32 %v1741, 3.8918573e-05
        %v1754 = vadd.f32 %v1753, 0.001143296
        %v1755 = vmul.f32 %v1741, %v1754
        %v1756 = vadd.f32 %v1755, 0.014752088
        %v1757 = vmul.f32 %v1741, %v1756
        %v1758 = vadd.f32 %v1757, 0.112945676
        %v1759 = vmul.f32 %v1741, %v1758
        %v1760 = vadd.f32 %v1759, 0.4994258
        %v1761 = vmul.f32 %v1741, %v1760
        %v1762 = vadd.f32 %v1761, 1.0
        %v1763 = vrcp.pop %v1762
        %v1764 = vmul.f32 %v1762, %v1763
        %v1765 = vsub.f32 1.0, %v1764
        %v1766 = vmul.f32 %v1763, %v1765
        %v1767 = vadd.f32 %v1763, %v1766
        %vm1768 = vweird.f32 %v1762
        %vm1769 = vweird.f32 %v1763
        %vm1770 = vmor %vm1768, %vm1769
        %v1771 = vsel %vm1770, %v1763, %v1767
        %v1772 = vand.u32 2147483647, %v1762
        %vm1773 = vcmp.eq.f32.partialorder %v1772, 8.507059e+37
        %v1774 = vand.u32 %v1762, 2147483648
        %v1775 = vor.u32 1.1754944e-38, %v1774
        %v1776 = vsel %vm1773, %v1775, %v1771
        %v1777 = vmul.f32 %v1752, %v1776
        %v1778 = vmin.f32 %v1777, 1.0
        %v1779 = vmax.f32 %v1778, -1.0
        %v1780 = vmul.f32 %v1569, %v1569
        %v1781 = vmin.f32 16.0, %v1780
        %v1782 = vmul.f32 %v1781, 2.1237322e-06
        %v1783 = vadd.f32 %v1782, 0.00028619796
        %v1784 = vmul.f32 %v1781, %v1783
        %v1785 = vadd.f32 %v1784, 0.0036580483
        %v1786 = vmul.f32 %v1781, %v1785
        %v1787 = vadd.f32 %v1786, 0.05243302
        %v1788 = vmul.f32 %v1781, %v1787
        %v1789 = vadd.f32 %v1788, 0.18741608
        %v1790 = vmul.f32 %v1781, %v1789
        %v1791 = vadd.f32 %v1790, 1.1283791
        %v1792 = vmul.f32 %v1569, %v1791
        %v1793 = vmul.f32 %v1781, 3.8918573e-05
        %v1794 = vadd.f32 %v1793, 0.001143296
        %v1795 = vmul.f32 %v1781, %v1794
        %v1796 = vadd.f32 %v1795, 0.014752088
        %v1797 = vmul.f32 %v1781, %v1796
        %v1798 = vadd.f32 %v1797, 0.112945676
        %v1799 = vmul.f32 %v1781, %v1798
        %v1800 = vadd.f32 %v1799, 0.4994258
        %v1801 = vmul.f32 %v1781, %v1800
        %v1802 = vadd.f32 %v1801, 1.0
        %v1803 = vrcp.pop %v1802
        %v1804 = vmul.f32 %v1802, %v1803
        %v1805 = vsub.f32 1.0, %v1804
        %v1806 = vmul.f32 %v1803, %v1805
        %v1807 = vadd.f32 %v1803, %v1806
        %vm1808 = vweird.f32 %v1802
        %vm1809 = vweird.f32 %v1803
        %vm1810 = vmor %vm1808, %vm1809
        %v1811 = vsel %vm1810, %v1803, %v1807
        %v1812 = vand.u32 2147483647, %v1802
        %vm1813 = vcmp.eq.f32.partialorder %v1812, 8.507059e+37
        %v1814 = vand.u32 %v1802, 2147483648
        %v1815 = vor.u32 1.1754944e-38, %v1814
        %v1816 = vsel %vm1813, %v1815, %v1811
        %v1817 = vmul.f32 %v1792, %v1816
        %v1818 = vmin.f32 %v1817, 1.0
        %v1819 = vmax.f32 %v1818, -1.0
        %v1820 = vmul.f32 %v1570, %v1570
        %v1821 = vmin.f32 16.0, %v1820
        %v1822 = vmul.f32 %v1821, 2.1237322e-06
        %v1823 = vadd.f32 %v1822, 0.00028619796
        %v1824 = vmul.f32 %v1821, %v1823
        %v1825 = vadd.f32 %v1824, 0.0036580483
        %v1826 = vmul.f32 %v1821, %v1825
        %v1827 = vadd.f32 %v1826, 0.05243302
        %v1828 = vmul.f32 %v1821, %v1827
        %v1829 = vadd.f32 %v1828, 0.18741608
        %v1830 = vmul.f32 %v1821, %v1829
        %v1831 = vadd.f32 %v1830, 1.1283791
        %v1832 = vmul.f32 %v1570, %v1831
        %v1833 = vmul.f32 %v1821, 3.8918573e-05
        %v1834 = vadd.f32 %v1833, 0.001143296
        %v1835 = vmul.f32 %v1821, %v1834
        %v1836 = vadd.f32 %v1835, 0.014752088
        %v1837 = vmul.f32 %v1821, %v1836
        %v1838 = vadd.f32 %v1837, 0.112945676
        %v1839 = vmul.f32 %v1821, %v1838
        %v1840 = vadd.f32 %v1839, 0.4994258
        %v1841 = vmul.f32 %v1821, %v1840
        %v1842 = vadd.f32 %v1841, 1.0
        %v1843 = vrcp.pop %v1842
        %v1844 = vmul.f32 %v1842, %v1843
        %v1845 = vsub.f32 1.0, %v1844
        %v1846 = vmul.f32 %v1843, %v1845
        %v1847 = vadd.f32 %v1843, %v1846
        %vm1848 = vweird.f32 %v1842
        %vm1849 = vweird.f32 %v1843
        %vm1850 = vmor %vm1848, %vm1849
        %v1851 = vsel %vm1850, %v1843, %v1847
        %v1852 = vand.u32 2147483647, %v1842
        %vm1853 = vcmp.eq.f32.partialorder %v1852, 8.507059e+37
        %v1854 = vand.u32 %v1842, 2147483648
        %v1855 = vor.u32 1.1754944e-38, %v1854
        %v1856 = vsel %vm1853, %v1855, %v1851
        %v1857 = vmul.f32 %v1832, %v1856
        %v1858 = vmin.f32 %v1857, 1.0
        %v1859 = vmax.f32 %v1858, -1.0
        %v1860 = vmul.f32 %v1571, %v1571
        %v1861 = vmin.f32 16.0, %v1860
        %v1862 = vmul.f32 %v1861, 2.1237322e-06
        %v1863 = vadd.f32 %v1862, 0.00028619796
        %v1864 = vmul.f32 %v1861, %v1863
        %v1865 = vadd.f32 %v1864, 0.0036580483
        %v1866 = vmul.f32 %v1861, %v1865
        %v1867 = vadd.f32 %v1866, 0.05243302
        %v1868 = vmul.f32 %v1861, %v1867
        %v1869 = vadd.f32 %v1868, 0.18741608
        %v1870 = vmul.f32 %v1861, %v1869
        %v1871 = vadd.f32 %v1870, 1.1283791
        %v1872 = vmul.f32 %v1571, %v1871
        %v1873 = vmul.f32 %v1861, 3.8918573e-05
        %v1874 = vadd.f32 %v1873, 0.001143296
        %v1875 = vmul.f32 %v1861, %v1874
        %v1876 = vadd.f32 %v1875, 0.014752088
        %v1877 = vmul.f32 %v1861, %v1876
        %v1878 = vadd.f32 %v1877, 0.112945676
        %v1879 = vmul.f32 %v1861, %v1878
        %v1880 = vadd.f32 %v1879, 0.4994258
        %v1881 = vmul.f32 %v1861, %v1880
        %v1882 = vadd.f32 %v1881, 1.0
        %v1883 = vrcp.pop %v1882
        %v1884 = vmul.f32 %v1882, %v1883
        %v1885 = vsub.f32 1.0, %v1884
        %v1886 = vmul.f32 %v1883, %v1885
        %v1887 = vadd.f32 %v1883, %v1886
        %vm1888 = vweird.f32 %v1882
        %vm1889 = vweird.f32 %v1883
        %vm1890 = vmor %vm1888, %vm1889
        %v1891 = vsel %vm1890, %v1883, %v1887
        %v1892 = vand.u32 2147483647, %v1882
        %vm1893 = vcmp.eq.f32.partialorder %v1892, 8.507059e+37
        %v1894 = vand.u32 %v1882, 2147483648
        %v1895 = vor.u32 1.1754944e-38, %v1894
        %v1896 = vsel %vm1893, %v1895, %v1891
        %v1897 = vmul.f32 %v1872, %v1896
        %v1898 = vmin.f32 %v1897, 1.0
        %v1899 = vmax.f32 %v1898, -1.0
        %v1900 = vmul.f32 %v1572, %v1572
        %v1901 = vmin.f32 16.0, %v1900
        %v1902 = vmul.f32 %v1901, 2.1237322e-06
        %v1903 = vadd.f32 %v1902, 0.00028619796
        %v1904 = vmul.f32 %v1901, %v1903
        %v1905 = vadd.f32 %v1904, 0.0036580483
        %v1906 = vmul.f32 %v1901, %v1905
        %v1907 = vadd.f32 %v1906, 0.05243302
        %v1908 = vmul.f32 %v1901, %v1907
        %v1909 = vadd.f32 %v1908, 0.18741608
        %v1910 = vmul.f32 %v1901, %v1909
        %v1911 = vadd.f32 %v1910, 1.1283791
        %v1912 = vmul.f32 %v1572, %v1911
        %v1913 = vmul.f32 %v1901, 3.8918573e-05
        %v1914 = vadd.f32 %v1913, 0.001143296
        %v1915 = vmul.f32 %v1901, %v1914
        %v1916 = vadd.f32 %v1915, 0.014752088
        %v1917 = vmul.f32 %v1901, %v1916
        %v1918 = vadd.f32 %v1917, 0.112945676
        %v1919 = vmul.f32 %v1901, %v1918
        %v1920 = vadd.f32 %v1919, 0.4994258
        %v1921 = vmul.f32 %v1901, %v1920
        %v1922 = vadd.f32 %v1921, 1.0
        %v1923 = vrcp.pop %v1922
        %v1924 = vmul.f32 %v1922, %v1923
        %v1925 = vsub.f32 1.0, %v1924
        %v1926 = vmul.f32 %v1923, %v1925
        %v1927 = vadd.f32 %v1923, %v1926
        %vm1928 = vweird.f32 %v1922
        %vm1929 = vweird.f32 %v1923
        %vm1930 = vmor %vm1928, %vm1929
        %v1931 = vsel %vm1930, %v1923, %v1927
        %v1932 = vand.u32 2147483647, %v1922
        %vm1933 = vcmp.eq.f32.partialorder %v1932, 8.507059e+37
        %v1934 = vand.u32 %v1922, 2147483648
        %v1935 = vor.u32 1.1754944e-38, %v1934
        %v1936 = vsel %vm1933, %v1935, %v1931
        %v1937 = vmul.f32 %v1912, %v1936
        %v1938 = vmin.f32 %v1937, 1.0
        %v1939 = vmax.f32 %v1938, -1.0
        %v1940 = vmul.f32 %v1573, %v1573
        %v1941 = vmin.f32 16.0, %v1940
        %v1942 = vmul.f32 %v1941, 2.1237322e-06
        %v1943 = vadd.f32 %v1942, 0.00028619796
        %v1944 = vmul.f32 %v1941, %v1943
        %v1945 = vadd.f32 %v1944, 0.0036580483
        %v1946 = vmul.f32 %v1941, %v1945
        %v1947 = vadd.f32 %v1946, 0.05243302
        %v1948 = vmul.f32 %v1941, %v1947
        %v1949 = vadd.f32 %v1948, 0.18741608
        %v1950 = vmul.f32 %v1941, %v1949
        %v1951 = vadd.f32 %v1950, 1.1283791
        %v1952 = vmul.f32 %v1573, %v1951
        %v1953 = vmul.f32 %v1941, 3.8918573e-05
        %v1954 = vadd.f32 %v1953, 0.001143296
        %v1955 = vmul.f32 %v1941, %v1954
        %v1956 = vadd.f32 %v1955, 0.014752088
        %v1957 = vmul.f32 %v1941, %v1956
        %v1958 = vadd.f32 %v1957, 0.112945676
        %v1959 = vmul.f32 %v1941, %v1958
        %v1960 = vadd.f32 %v1959, 0.4994258
        %v1961 = vmul.f32 %v1941, %v1960
        %v1962 = vadd.f32 %v1961, 1.0
        %v1963 = vrcp.pop %v1962
        %v1964 = vmul.f32 %v1962, %v1963
        %v1965 = vsub.f32 1.0, %v1964
        %v1966 = vmul.f32 %v1963, %v1965
        %v1967 = vadd.f32 %v1963, %v1966
        %vm1968 = vweird.f32 %v1962
        %vm1969 = vweird.f32 %v1963
        %vm1970 = vmor %vm1968, %vm1969
        %v1971 = vsel %vm1970, %v1963, %v1967
        %v1972 = vand.u32 2147483647, %v1962
        %vm1973 = vcmp.eq.f32.partialorder %v1972, 8.507059e+37
        %v1974 = vand.u32 %v1962, 2147483648
        %v1975 = vor.u32 1.1754944e-38, %v1974
        %v1976 = vsel %vm1973, %v1975, %v1971
        %v1977 = vmul.f32 %v1952, %v1976
        %v1978 = vmin.f32 %v1977, 1.0
        %v1979 = vmax.f32 %v1978, -1.0
        %v1980 = vmul.f32 %v1574, %v1574
        %v1981 = vmin.f32 16.0, %v1980
        %v1982 = vmul.f32 %v1981, 2.1237322e-06
        %v1983 = vadd.f32 %v1982, 0.00028619796
        %v1984 = vmul.f32 %v1981, %v1983
        %v1985 = vadd.f32 %v1984, 0.0036580483
        %v1986 = vmul.f32 %v1981, %v1985
        %v1987 = vadd.f32 %v1986, 0.05243302
        %v1988 = vmul.f32 %v1981, %v1987
        %v1989 = vadd.f32 %v1988, 0.18741608
        %v1990 = vmul.f32 %v1981, %v1989
        %v1991 = vadd.f32 %v1990, 1.1283791
        %v1992 = vmul.f32 %v1574, %v1991
        %v1993 = vmul.f32 %v1981, 3.8918573e-05
        %v1994 = vadd.f32 %v1993, 0.001143296
        %v1995 = vmul.f32 %v1981, %v1994
        %v1996 = vadd.f32 %v1995, 0.014752088
        %v1997 = vmul.f32 %v1981, %v1996
        %v1998 = vadd.f32 %v1997, 0.112945676
        %v1999 = vmul.f32 %v1981, %v1998
        %v2000 = vadd.f32 %v1999, 0.4994258
        %v2001 = vmul.f32 %v1981, %v2000
        %v2002 = vadd.f32 %v2001, 1.0
        %v2003 = vrcp.pop %v2002
        %v2004 = vmul.f32 %v2002, %v2003
        %v2005 = vsub.f32 1.0, %v2004
        %v2006 = vmul.f32 %v2003, %v2005
        %v2007 = vadd.f32 %v2003, %v2006
        %vm2008 = vweird.f32 %v2002
        %vm2009 = vweird.f32 %v2003
        %vm2010 = vmor %vm2008, %vm2009
        %v2011 = vsel %vm2010, %v2003, %v2007
        %v2012 = vand.u32 2147483647, %v2002
        %vm2013 = vcmp.eq.f32.partialorder %v2012, 8.507059e+37
        %v2014 = vand.u32 %v2002, 2147483648
        %v2015 = vor.u32 1.1754944e-38, %v2014
        %v2016 = vsel %vm2013, %v2015, %v2011
        %v2017 = vmul.f32 %v1992, %v2016
        %v2018 = vmin.f32 %v2017, 1.0
        %v2019 = vmax.f32 %v2018, -1.0
        %v2020 = vmul.f32 %v1575, %v1575
        %v2021 = vmin.f32 16.0, %v2020
        %v2022 = vmul.f32 %v2021, 2.1237322e-06
        %v2023 = vadd.f32 %v2022, 0.00028619796
        %v2024 = vmul.f32 %v2021, %v2023
        %v2025 = vadd.f32 %v2024, 0.0036580483
        %v2026 = vmul.f32 %v2021, %v2025
        %v2027 = vadd.f32 %v2026, 0.05243302
        %v2028 = vmul.f32 %v2021, %v2027
        %v2029 = vadd.f32 %v2028, 0.18741608
        %v2030 = vmul.f32 %v2021, %v2029
        %v2031 = vadd.f32 %v2030, 1.1283791
        %v2032 = vmul.f32 %v1575, %v2031
        %v2033 = vmul.f32 %v2021, 3.8918573e-05
        %v2034 = vadd.f32 %v2033, 0.001143296
        %v2035 = vmul.f32 %v2021, %v2034
        %v2036 = vadd.f32 %v2035, 0.014752088
        %v2037 = vmul.f32 %v2021, %v2036
        %v2038 = vadd.f32 %v2037, 0.112945676
        %v2039 = vmul.f32 %v2021, %v2038
        %v2040 = vadd.f32 %v2039, 0.4994258
        %v2041 = vmul.f32 %v2021, %v2040
        %v2042 = vadd.f32 %v2041, 1.0
        %v2043 = vrcp.pop %v2042
        %v2044 = vmul.f32 %v2042, %v2043
        %v2045 = vsub.f32 1.0, %v2044
        %v2046 = vmul.f32 %v2043, %v2045
        %v2047 = vadd.f32 %v2043, %v2046
        %vm2048 = vweird.f32 %v2042
        %vm2049 = vweird.f32 %v2043
        %vm2050 = vmor %vm2048, %vm2049
        %v2051 = vsel %vm2050, %v2043, %v2047
        %v2052 = vand.u32 2147483647, %v2042
        %vm2053 = vcmp.eq.f32.partialorder %v2052, 8.507059e+37
        %v2054 = vand.u32 %v2042, 2147483648
        %v2055 = vor.u32 1.1754944e-38, %v2054
        %v2056 = vsel %vm2053, %v2055, %v2051
        %v2057 = vmul.f32 %v2032, %v2056
        %v2058 = vmin.f32 %v2057, 1.0
        %v2059 = vmax.f32 %v2058, -1.0
        %v2060 = vmul.f32 %v1576, %v1576
        %v2061 = vmin.f32 16.0, %v2060
        %v2062 = vmul.f32 %v2061, 2.1237322e-06
        %v2063 = vadd.f32 %v2062, 0.00028619796
        %v2064 = vmul.f32 %v2061, %v2063
        %v2065 = vadd.f32 %v2064, 0.0036580483
        %v2066 = vmul.f32 %v2061, %v2065
        %v2067 = vadd.f32 %v2066, 0.05243302
        %v2068 = vmul.f32 %v2061, %v2067
        %v2069 = vadd.f32 %v2068, 0.18741608
        %v2070 = vmul.f32 %v2061, %v2069
        %v2071 = vadd.f32 %v2070, 1.1283791
        %v2072 = vmul.f32 %v1576, %v2071
        %v2073 = vmul.f32 %v2061, 3.8918573e-05
        %v2074 = vadd.f32 %v2073, 0.001143296
        %v2075 = vmul.f32 %v2061, %v2074
        %v2076 = vadd.f32 %v2075, 0.014752088
        %v2077 = vmul.f32 %v2061, %v2076
        %v2078 = vadd.f32 %v2077, 0.112945676
        %v2079 = vmul.f32 %v2061, %v2078
        %v2080 = vadd.f32 %v2079, 0.4994258
        %v2081 = vmul.f32 %v2061, %v2080
        %v2082 = vadd.f32 %v2081, 1.0
        %v2083 = vrcp.pop %v2082
        %v2084 = vmul.f32 %v2082, %v2083
        %v2085 = vsub.f32 1.0, %v2084
        %v2086 = vmul.f32 %v2083, %v2085
        %v2087 = vadd.f32 %v2083, %v2086
        %vm2088 = vweird.f32 %v2082
        %vm2089 = vweird.f32 %v2083
        %vm2090 = vmor %vm2088, %vm2089
        %v2091 = vsel %vm2090, %v2083, %v2087
        %v2092 = vand.u32 2147483647, %v2082
        %vm2093 = vcmp.eq.f32.partialorder %v2092, 8.507059e+37
        %v2094 = vand.u32 %v2082, 2147483648
        %v2095 = vor.u32 1.1754944e-38, %v2094
        %v2096 = vsel %vm2093, %v2095, %v2091
        %v2097 = vmul.f32 %v2072, %v2096
        %v2098 = vmin.f32 %v2097, 1.0
        %v2099 = vmax.f32 %v2098, -1.0
        %v2100 = vmul.f32 %v1577, %v1577
        %v2101 = vmin.f32 16.0, %v2100
        %v2102 = vmul.f32 %v2101, 2.1237322e-06
        %v2103 = vadd.f32 %v2102, 0.00028619796
        %v2104 = vmul.f32 %v2101, %v2103
        %v2105 = vadd.f32 %v2104, 0.0036580483
        %v2106 = vmul.f32 %v2101, %v2105
        %v2107 = vadd.f32 %v2106, 0.05243302
        %v2108 = vmul.f32 %v2101, %v2107
        %v2109 = vadd.f32 %v2108, 0.18741608
        %v2110 = vmul.f32 %v2101, %v2109
        %v2111 = vadd.f32 %v2110, 1.1283791
        %v2112 = vmul.f32 %v1577, %v2111
        %v2113 = vmul.f32 %v2101, 3.8918573e-05
        %v2114 = vadd.f32 %v2113, 0.001143296
        %v2115 = vmul.f32 %v2101, %v2114
        %v2116 = vadd.f32 %v2115, 0.014752088
        %v2117 = vmul.f32 %v2101, %v2116
        %v2118 = vadd.f32 %v2117, 0.112945676
        %v2119 = vmul.f32 %v2101, %v2118
        %v2120 = vadd.f32 %v2119, 0.4994258
        %v2121 = vmul.f32 %v2101, %v2120
        %v2122 = vadd.f32 %v2121, 1.0
        %v2123 = vrcp.pop %v2122
        %v2124 = vmul.f32 %v2122, %v2123
        %v2125 = vsub.f32 1.0, %v2124
        %v2126 = vmul.f32 %v2123, %v2125
        %v2127 = vadd.f32 %v2123, %v2126
        %vm2128 = vweird.f32 %v2122
        %vm2129 = vweird.f32 %v2123
        %vm2130 = vmor %vm2128, %vm2129
        %v2131 = vsel %vm2130, %v2123, %v2127
        %v2132 = vand.u32 2147483647, %v2122
        %vm2133 = vcmp.eq.f32.partialorder %v2132, 8.507059e+37
        %v2134 = vand.u32 %v2122, 2147483648
        %v2135 = vor.u32 1.1754944e-38, %v2134
        %v2136 = vsel %vm2133, %v2135, %v2131
        %v2137 = vmul.f32 %v2112, %v2136
        %v2138 = vmin.f32 %v2137, 1.0
        %v2139 = vmax.f32 %v2138, -1.0
        %v2140 = vmul.f32 %v1578, %v1578
        %v2141 = vmin.f32 16.0, %v2140
        %v2142 = vmul.f32 %v2141, 2.1237322e-06
        %v2143 = vadd.f32 %v2142, 0.00028619796
        %v2144 = vmul.f32 %v2141, %v2143
        %v2145 = vadd.f32 %v2144, 0.0036580483
        %v2146 = vmul.f32 %v2141, %v2145
        %v2147 = vadd.f32 %v2146, 0.05243302
        %v2148 = vmul.f32 %v2141, %v2147
        %v2149 = vadd.f32 %v2148, 0.18741608
        %v2150 = vmul.f32 %v2141, %v2149
        %v2151 = vadd.f32 %v2150, 1.1283791
        %v2152 = vmul.f32 %v1578, %v2151
        %v2153 = vmul.f32 %v2141, 3.8918573e-05
        %v2154 = vadd.f32 %v2153, 0.001143296
        %v2155 = vmul.f32 %v2141, %v2154
        %v2156 = vadd.f32 %v2155, 0.014752088
        %v2157 = vmul.f32 %v2141, %v2156
        %v2158 = vadd.f32 %v2157, 0.112945676
        %v2159 = vmul.f32 %v2141, %v2158
        %v2160 = vadd.f32 %v2159, 0.4994258
        %v2161 = vmul.f32 %v2141, %v2160
        %v2162 = vadd.f32 %v2161, 1.0
        %v2163 = vrcp.pop %v2162
        %v2164 = vmul.f32 %v2162, %v2163
        %v2165 = vsub.f32 1.0, %v2164
        %v2166 = vmul.f32 %v2163, %v2165
        %v2167 = vadd.f32 %v2163, %v2166
        %vm2168 = vweird.f32 %v2162
        %vm2169 = vweird.f32 %v2163
        %vm2170 = vmor %vm2168, %vm2169
        %v2171 = vsel %vm2170, %v2163, %v2167
        %v2172 = vand.u32 2147483647, %v2162
        %vm2173 = vcmp.eq.f32.partialorder %v2172, 8.507059e+37
        %v2174 = vand.u32 %v2162, 2147483648
        %v2175 = vor.u32 1.1754944e-38, %v2174
        %v2176 = vsel %vm2173, %v2175, %v2171
        %v2177 = vmul.f32 %v2152, %v2176
        %v2178 = vmin.f32 %v2177, 1.0
        %v2179 = vmax.f32 %v2178, -1.0
        %v2180 = vmul.f32 %v1579, %v1579
        %v2181 = vmin.f32 16.0, %v2180
        %v2182 = vmul.f32 %v2181, 2.1237322e-06
        %v2183 = vadd.f32 %v2182, 0.00028619796
        %v2184 = vmul.f32 %v2181, %v2183
        %v2185 = vadd.f32 %v2184, 0.0036580483
        %v2186 = vmul.f32 %v2181, %v2185
        %v2187 = vadd.f32 %v2186, 0.05243302
        %v2188 = vmul.f32 %v2181, %v2187
        %v2189 = vadd.f32 %v2188, 0.18741608
        %v2190 = vmul.f32 %v2181, %v2189
        %v2191 = vadd.f32 %v2190, 1.1283791
        %v2192 = vmul.f32 %v1579, %v2191
        %v2193 = vmul.f32 %v2181, 3.8918573e-05
        %v2194 = vadd.f32 %v2193, 0.001143296
        %v2195 = vmul.f32 %v2181, %v2194
        %v2196 = vadd.f32 %v2195, 0.014752088
        %v2197 = vmul.f32 %v2181, %v2196
        %v2198 = vadd.f32 %v2197, 0.112945676
        %v2199 = vmul.f32 %v2181, %v2198
        %v2200 = vadd.f32 %v2199, 0.4994258
        %v2201 = vmul.f32 %v2181, %v2200
        %v2202 = vadd.f32 %v2201, 1.0
        %v2203 = vrcp.pop %v2202
        %v2204 = vmul.f32 %v2202, %v2203
        %v2205 = vsub.f32 1.0, %v2204
        %v2206 = vmul.f32 %v2203, %v2205
        %v2207 = vadd.f32 %v2203, %v2206
        %vm2208 = vweird.f32 %v2202
        %vm2209 = vweird.f32 %v2203
        %vm2210 = vmor %vm2208, %vm2209
        %v2211 = vsel %vm2210, %v2203, %v2207
        %v2212 = vand.u32 2147483647, %v2202
        %vm2213 = vcmp.eq.f32.partialorder %v2212, 8.507059e+37
        %v2214 = vand.u32 %v2202, 2147483648
        %v2215 = vor.u32 1.1754944e-38, %v2214
        %v2216 = vsel %vm2213, %v2215, %v2211
        %v2217 = vmul.f32 %v2192, %v2216
        %v2218 = vmin.f32 %v2217, 1.0
        %v2219 = vmax.f32 %v2218, -1.0
        %v2220 = vadd.f32 %v1619, 1.0
        %v2221 = vadd.f32 %v1659, 1.0
        %v2222 = vadd.f32 %v1699, 1.0
        %v2223 = vadd.f32 %v1739, 1.0
        %v2224 = vadd.f32 %v1779, 1.0
        %v2225 = vadd.f32 %v1819, 1.0
        %v2226 = vadd.f32 %v1859, 1.0
        %v2227 = vadd.f32 %v1899, 1.0
        %v2228 = vadd.f32 %v1939, 1.0
        %v2229 = vadd.f32 %v1979, 1.0
        %v2230 = vadd.f32 %v2019, 1.0
        %v2231 = vadd.f32 %v2059, 1.0
        %v2232 = vadd.f32 %v2099, 1.0
        %v2233 = vadd.f32 %v2139, 1.0
        %v2234 = vadd.f32 %v2179, 1.0
        %v2235 = vadd.f32 %v2219, 1.0
        %v2236 = vmul.f32 %v1548, %v2220
        %v2237 = vmul.f32 %v1549, %v2221
        %v2238 = vmul.f32 %v1550, %v2222
        %v2239 = vmul.f32 %v1551, %v2223
        %v2240 = vmul.f32 %v1552, %v2224
        %v2241 = vmul.f32 %v1553, %v2225
        %v2242 = vmul.f32 %v1554, %v2226
        %v2243 = vmul.f32 %v1555, %v2227
        %v2244 = vmul.f32 %v1556, %v2228
        %v2245 = vmul.f32 %v1557, %v2229
        %v2246 = vmul.f32 %v1558, %v2230
        %v2247 = vmul.f32 %v1559, %v2231
        %v2248 = vmul.f32 %v1560, %v2232
        %v2249 = vmul.f32 %v1561, %v2233
        %v2250 = vmul.f32 %v1562, %v2234
        %v2251 = vmul.f32 %v1563, %v2235
        %v2252 = vmul.f32 %v1532, 0.5
        %v2253 = vmul.f32 %v1533, 0.5
        %v2254 = vmul.f32 %v1534, 0.5
        %v2255 = vmul.f32 %v1535, 0.5
        %v2256 = vmul.f32 %v1536, 0.5
        %v2257 = vmul.f32 %v1537, 0.5
        %v2258 = vmul.f32 %v1538, 0.5
        %v2259 = vmul.f32 %v1539, 0.5
        %v2260 = vmul.f32 %v1540, 0.5
        %v2261 = vmul.f32 %v1541, 0.5
        %v2262 = vmul.f32 %v1542, 0.5
        %v2263 = vmul.f32 %v1543, 0.5
        %v2264 = vmul.f32 %v1544, 0.5
        %v2265 = vmul.f32 %v1545, 0.5
        %v2266 = vmul.f32 %v1546, 0.5
        %v2267 = vmul.f32 %v1547, 0.5
        %v2268 = vmul.f32 %v1532, 0.70710677
        %v2269 = vmul.f32 %v1533, 0.70710677
        %v2270 = vmul.f32 %v1534, 0.70710677
        %v2271 = vmul.f32 %v1535, 0.70710677
        %v2272 = vmul.f32 %v1536, 0.70710677
        %v2273 = vmul.f32 %v1537, 0.70710677
        %v2274 = vmul.f32 %v1538, 0.70710677
        %v2275 = vmul.f32 %v1539, 0.70710677
        %v2276 = vmul.f32 %v1540, 0.70710677
        %v2277 = vmul.f32 %v1541, 0.70710677
        %v2278 = vmul.f32 %v1542, 0.70710677
        %v2279 = vmul.f32 %v1543, 0.70710677
        %v2280 = vmul.f32 %v1544, 0.70710677
        %v2281 = vmul.f32 %v1545, 0.70710677
        %v2282 = vmul.f32 %v1546, 0.70710677
        %v2283 = vmul.f32 %v1547, 0.70710677
        %v2284 = vmul.f32 %v2268, %v2268
        %v2285 = vmin.f32 16.0, %v2284
        %v2286 = vmul.f32 %v2285, 2.1237322e-06
        %v2287 = vadd.f32 %v2286, 0.00028619796
        %v2288 = vmul.f32 %v2285, %v2287
        %v2289 = vadd.f32 %v2288, 0.0036580483
        %v2290 = vmul.f32 %v2285, %v2289
        %v2291 = vadd.f32 %v2290, 0.05243302
        %v2292 = vmul.f32 %v2285, %v2291
        %v2293 = vadd.f32 %v2292, 0.18741608
        %v2294 = vmul.f32 %v2285, %v2293
        %v2295 = vadd.f32 %v2294, 1.1283791
        %v2296 = vmul.f32 %v2268, %v2295
        %v2297 = vmul.f32 %v2285, 3.8918573e-05
        %v2298 = vadd.f32 %v2297, 0.001143296
        %v2299 = vmul.f32 %v2285, %v2298
        %v2300 = vadd.f32 %v2299, 0.014752088
        %v2301 = vmul.f32 %v2285, %v2300
        %v2302 = vadd.f32 %v2301, 0.112945676
        %v2303 = vmul.f32 %v2285, %v2302
        %v2304 = vadd.f32 %v2303, 0.4994258
        %v2305 = vmul.f32 %v2285, %v2304
        %v2306 = vadd.f32 %v2305, 1.0
        %v2307 = vrcp.pop %v2306
        %v2308 = vmul.f32 %v2306, %v2307
        %v2309 = vsub.f32 1.0, %v2308
        %v2310 = vmul.f32 %v2307, %v2309
        %v2311 = vadd.f32 %v2307, %v2310
        %vm2312 = vweird.f32 %v2306
        %vm2313 = vweird.f32 %v2307
        %vm2314 = vmor %vm2312, %vm2313
        %v2315 = vsel %vm2314, %v2307, %v2311
        %v2316 = vand.u32 2147483647, %v2306
        %vm2317 = vcmp.eq.f32.partialorder %v2316, 8.507059e+37
        %v2318 = vand.u32 %v2306, 2147483648
        %v2319 = vor.u32 1.1754944e-38, %v2318
        %v2320 = vsel %vm2317, %v2319, %v2315
        %v2321 = vmul.f32 %v2296, %v2320
        %v2322 = vmin.f32 %v2321, 1.0
        %v2323 = vmax.f32 %v2322, -1.0
        %v2324 = vmul.f32 %v2269, %v2269
        %v2325 = vmin.f32 16.0, %v2324
        %v2326 = vmul.f32 %v2325, 2.1237322e-06
        %v2327 = vadd.f32 %v2326, 0.00028619796
        %v2328 = vmul.f32 %v2325, %v2327
        %v2329 = vadd.f32 %v2328, 0.0036580483
        %v2330 = vmul.f32 %v2325, %v2329
        %v2331 = vadd.f32 %v2330, 0.05243302
        %v2332 = vmul.f32 %v2325, %v2331
        %v2333 = vadd.f32 %v2332, 0.18741608
        %v2334 = vmul.f32 %v2325, %v2333
        %v2335 = vadd.f32 %v2334, 1.1283791
        %v2336 = vmul.f32 %v2269, %v2335
        %v2337 = vmul.f32 %v2325, 3.8918573e-05
        %v2338 = vadd.f32 %v2337, 0.001143296
        %v2339 = vmul.f32 %v2325, %v2338
        %v2340 = vadd.f32 %v2339, 0.014752088
        %v2341 = vmul.f32 %v2325, %v2340
        %v2342 = vadd.f32 %v2341, 0.112945676
        %v2343 = vmul.f32 %v2325, %v2342
        %v2344 = vadd.f32 %v2343, 0.4994258
        %v2345 = vmul.f32 %v2325, %v2344
        %v2346 = vadd.f32 %v2345, 1.0
        %v2347 = vrcp.pop %v2346
        %v2348 = vmul.f32 %v2346, %v2347
        %v2349 = vsub.f32 1.0, %v2348
        %v2350 = vmul.f32 %v2347, %v2349
        %v2351 = vadd.f32 %v2347, %v2350
        %vm2352 = vweird.f32 %v2346
        %vm2353 = vweird.f32 %v2347
        %vm2354 = vmor %vm2352, %vm2353
        %v2355 = vsel %vm2354, %v2347, %v2351
        %v2356 = vand.u32 2147483647, %v2346
        %vm2357 = vcmp.eq.f32.partialorder %v2356, 8.507059e+37
        %v2358 = vand.u32 %v2346, 2147483648
        %v2359 = vor.u32 1.1754944e-38, %v2358
        %v2360 = vsel %vm2357, %v2359, %v2355
        %v2361 = vmul.f32 %v2336, %v2360
        %v2362 = vmin.f32 %v2361, 1.0
        %v2363 = vmax.f32 %v2362, -1.0
        %v2364 = vmul.f32 %v2270, %v2270
        %v2365 = vmin.f32 16.0, %v2364
        %v2366 = vmul.f32 %v2365, 2.1237322e-06
        %v2367 = vadd.f32 %v2366, 0.00028619796
        %v2368 = vmul.f32 %v2365, %v2367
        %v2369 = vadd.f32 %v2368, 0.0036580483
        %v2370 = vmul.f32 %v2365, %v2369
        %v2371 = vadd.f32 %v2370, 0.05243302
        %v2372 = vmul.f32 %v2365, %v2371
        %v2373 = vadd.f32 %v2372, 0.18741608
        %v2374 = vmul.f32 %v2365, %v2373
        %v2375 = vadd.f32 %v2374, 1.1283791
        %v2376 = vmul.f32 %v2270, %v2375
        %v2377 = vmul.f32 %v2365, 3.8918573e-05
        %v2378 = vadd.f32 %v2377, 0.001143296
        %v2379 = vmul.f32 %v2365, %v2378
        %v2380 = vadd.f32 %v2379, 0.014752088
        %v2381 = vmul.f32 %v2365, %v2380
        %v2382 = vadd.f32 %v2381, 0.112945676
        %v2383 = vmul.f32 %v2365, %v2382
        %v2384 = vadd.f32 %v2383, 0.4994258
        %v2385 = vmul.f32 %v2365, %v2384
        %v2386 = vadd.f32 %v2385, 1.0
        %v2387 = vrcp.pop %v2386
        %v2388 = vmul.f32 %v2386, %v2387
        %v2389 = vsub.f32 1.0, %v2388
        %v2390 = vmul.f32 %v2387, %v2389
        %v2391 = vadd.f32 %v2387, %v2390
        %vm2392 = vweird.f32 %v2386
        %vm2393 = vweird.f32 %v2387
        %vm2394 = vmor %vm2392, %vm2393
        %v2395 = vsel %vm2394, %v2387, %v2391
        %v2396 = vand.u32 2147483647, %v2386
        %vm2397 = vcmp.eq.f32.partialorder %v2396, 8.507059e+37
        %v2398 = vand.u32 %v2386, 2147483648
        %v2399 = vor.u32 1.1754944e-38, %v2398
        %v2400 = vsel %vm2397, %v2399, %v2395
        %v2401 = vmul.f32 %v2376, %v2400
        %v2402 = vmin.f32 %v2401, 1.0
        %v2403 = vmax.f32 %v2402, -1.0
        %v2404 = vmul.f32 %v2271, %v2271
        %v2405 = vmin.f32 16.0, %v2404
        %v2406 = vmul.f32 %v2405, 2.1237322e-06
        %v2407 = vadd.f32 %v2406, 0.00028619796
        %v2408 = vmul.f32 %v2405, %v2407
        %v2409 = vadd.f32 %v2408, 0.0036580483
        %v2410 = vmul.f32 %v2405, %v2409
        %v2411 = vadd.f32 %v2410, 0.05243302
        %v2412 = vmul.f32 %v2405, %v2411
        %v2413 = vadd.f32 %v2412, 0.18741608
        %v2414 = vmul.f32 %v2405, %v2413
        %v2415 = vadd.f32 %v2414, 1.1283791
        %v2416 = vmul.f32 %v2271, %v2415
        %v2417 = vmul.f32 %v2405, 3.8918573e-05
        %v2418 = vadd.f32 %v2417, 0.001143296
        %v2419 = vmul.f32 %v2405, %v2418
        %v2420 = vadd.f32 %v2419, 0.014752088
        %v2421 = vmul.f32 %v2405, %v2420
        %v2422 = vadd.f32 %v2421, 0.112945676
        %v2423 = vmul.f32 %v2405, %v2422
        %v2424 = vadd.f32 %v2423, 0.4994258
        %v2425 = vmul.f32 %v2405, %v2424
        %v2426 = vadd.f32 %v2425, 1.0
        %v2427 = vrcp.pop %v2426
        %v2428 = vmul.f32 %v2426, %v2427
        %v2429 = vsub.f32 1.0, %v2428
        %v2430 = vmul.f32 %v2427, %v2429
        %v2431 = vadd.f32 %v2427, %v2430
        %vm2432 = vweird.f32 %v2426
        %vm2433 = vweird.f32 %v2427
        %vm2434 = vmor %vm2432, %vm2433
        %v2435 = vsel %vm2434, %v2427, %v2431
        %v2436 = vand.u32 2147483647, %v2426
        %vm2437 = vcmp.eq.f32.partialorder %v2436, 8.507059e+37
        %v2438 = vand.u32 %v2426, 2147483648
        %v2439 = vor.u32 1.1754944e-38, %v2438
        %v2440 = vsel %vm2437, %v2439, %v2435
        %v2441 = vmul.f32 %v2416, %v2440
        %v2442 = vmin.f32 %v2441, 1.0
        %v2443 = vmax.f32 %v2442, -1.0
        %v2444 = vmul.f32 %v2272, %v2272
        %v2445 = vmin.f32 16.0, %v2444
        %v2446 = vmul.f32 %v2445, 2.1237322e-06
        %v2447 = vadd.f32 %v2446, 0.00028619796
        %v2448 = vmul.f32 %v2445, %v2447
        %v2449 = vadd.f32 %v2448, 0.0036580483
        %v2450 = vmul.f32 %v2445, %v2449
        %v2451 = vadd.f32 %v2450, 0.05243302
        %v2452 = vmul.f32 %v2445, %v2451
        %v2453 = vadd.f32 %v2452, 0.18741608
        %v2454 = vmul.f32 %v2445, %v2453
        %v2455 = vadd.f32 %v2454, 1.1283791
        %v2456 = vmul.f32 %v2272, %v2455
        %v2457 = vmul.f32 %v2445, 3.8918573e-05
        %v2458 = vadd.f32 %v2457, 0.001143296
        %v2459 = vmul.f32 %v2445, %v2458
        %v2460 = vadd.f32 %v2459, 0.014752088
        %v2461 = vmul.f32 %v2445, %v2460
        %v2462 = vadd.f32 %v2461, 0.112945676
        %v2463 = vmul.f32 %v2445, %v2462
        %v2464 = vadd.f32 %v2463, 0.4994258
        %v2465 = vmul.f32 %v2445, %v2464
        %v2466 = vadd.f32 %v2465, 1.0
        %v2467 = vrcp.pop %v2466
        %v2468 = vmul.f32 %v2466, %v2467
        %v2469 = vsub.f32 1.0, %v2468
        %v2470 = vmul.f32 %v2467, %v2469
        %v2471 = vadd.f32 %v2467, %v2470
        %vm2472 = vweird.f32 %v2466
        %vm2473 = vweird.f32 %v2467
        %vm2474 = vmor %vm2472, %vm2473
        %v2475 = vsel %vm2474, %v2467, %v2471
        %v2476 = vand.u32 2147483647, %v2466
        %vm2477 = vcmp.eq.f32.partialorder %v2476, 8.507059e+37
        %v2478 = vand.u32 %v2466, 2147483648
        %v2479 = vor.u32 1.1754944e-38, %v2478
        %v2480 = vsel %vm2477, %v2479, %v2475
        %v2481 = vmul.f32 %v2456, %v2480
        %v2482 = vmin.f32 %v2481, 1.0
        %v2483 = vmax.f32 %v2482, -1.0
        %v2484 = vmul.f32 %v2273, %v2273
        %v2485 = vmin.f32 16.0, %v2484
        %v2486 = vmul.f32 %v2485, 2.1237322e-06
        %v2487 = vadd.f32 %v2486, 0.00028619796
        %v2488 = vmul.f32 %v2485, %v2487
        %v2489 = vadd.f32 %v2488, 0.0036580483
        %v2490 = vmul.f32 %v2485, %v2489
        %v2491 = vadd.f32 %v2490, 0.05243302
        %v2492 = vmul.f32 %v2485, %v2491
        %v2493 = vadd.f32 %v2492, 0.18741608
        %v2494 = vmul.f32 %v2485, %v2493
        %v2495 = vadd.f32 %v2494, 1.1283791
        %v2496 = vmul.f32 %v2273, %v2495
        %v2497 = vmul.f32 %v2485, 3.8918573e-05
        %v2498 = vadd.f32 %v2497, 0.001143296
        %v2499 = vmul.f32 %v2485, %v2498
        %v2500 = vadd.f32 %v2499, 0.014752088
        %v2501 = vmul.f32 %v2485, %v2500
        %v2502 = vadd.f32 %v2501, 0.112945676
        %v2503 = vmul.f32 %v2485, %v2502
        %v2504 = vadd.f32 %v2503, 0.4994258
        %v2505 = vmul.f32 %v2485, %v2504
        %v2506 = vadd.f32 %v2505, 1.0
        %v2507 = vrcp.pop %v2506
        %v2508 = vmul.f32 %v2506, %v2507
        %v2509 = vsub.f32 1.0, %v2508
        %v2510 = vmul.f32 %v2507, %v2509
        %v2511 = vadd.f32 %v2507, %v2510
        %vm2512 = vweird.f32 %v2506
        %vm2513 = vweird.f32 %v2507
        %vm2514 = vmor %vm2512, %vm2513
        %v2515 = vsel %vm2514, %v2507, %v2511
        %v2516 = vand.u32 2147483647, %v2506
        %vm2517 = vcmp.eq.f32.partialorder %v2516, 8.507059e+37
        %v2518 = vand.u32 %v2506, 2147483648
        %v2519 = vor.u32 1.1754944e-38, %v2518
        %v2520 = vsel %vm2517, %v2519, %v2515
        %v2521 = vmul.f32 %v2496, %v2520
        %v2522 = vmin.f32 %v2521, 1.0
        %v2523 = vmax.f32 %v2522, -1.0
        %v2524 = vmul.f32 %v2274, %v2274
        %v2525 = vmin.f32 16.0, %v2524
        %v2526 = vmul.f32 %v2525, 2.1237322e-06
        %v2527 = vadd.f32 %v2526, 0.00028619796
        %v2528 = vmul.f32 %v2525, %v2527
        %v2529 = vadd.f32 %v2528, 0.0036580483
        %v2530 = vmul.f32 %v2525, %v2529
        %v2531 = vadd.f32 %v2530, 0.05243302
        %v2532 = vmul.f32 %v2525, %v2531
        %v2533 = vadd.f32 %v2532, 0.18741608
        %v2534 = vmul.f32 %v2525, %v2533
        %v2535 = vadd.f32 %v2534, 1.1283791
        %v2536 = vmul.f32 %v2274, %v2535
        %v2537 = vmul.f32 %v2525, 3.8918573e-05
        %v2538 = vadd.f32 %v2537, 0.001143296
        %v2539 = vmul.f32 %v2525, %v2538
        %v2540 = vadd.f32 %v2539, 0.014752088
        %v2541 = vmul.f32 %v2525, %v2540
        %v2542 = vadd.f32 %v2541, 0.112945676
        %v2543 = vmul.f32 %v2525, %v2542
        %v2544 = vadd.f32 %v2543, 0.4994258
        %v2545 = vmul.f32 %v2525, %v2544
        %v2546 = vadd.f32 %v2545, 1.0
        %v2547 = vrcp.pop %v2546
        %v2548 = vmul.f32 %v2546, %v2547
        %v2549 = vsub.f32 1.0, %v2548
        %v2550 = vmul.f32 %v2547, %v2549
        %v2551 = vadd.f32 %v2547, %v2550
        %vm2552 = vweird.f32 %v2546
        %vm2553 = vweird.f32 %v2547
        %vm2554 = vmor %vm2552, %vm2553
        %v2555 = vsel %vm2554, %v2547, %v2551
        %v2556 = vand.u32 2147483647, %v2546
        %vm2557 = vcmp.eq.f32.partialorder %v2556, 8.507059e+37
        %v2558 = vand.u32 %v2546, 2147483648
        %v2559 = vor.u32 1.1754944e-38, %v2558
        %v2560 = vsel %vm2557, %v2559, %v2555
        %v2561 = vmul.f32 %v2536, %v2560
        %v2562 = vmin.f32 %v2561, 1.0
        %v2563 = vmax.f32 %v2562, -1.0
        %v2564 = vmul.f32 %v2275, %v2275
        %v2565 = vmin.f32 16.0, %v2564
        %v2566 = vmul.f32 %v2565, 2.1237322e-06
        %v2567 = vadd.f32 %v2566, 0.00028619796
        %v2568 = vmul.f32 %v2565, %v2567
        %v2569 = vadd.f32 %v2568, 0.0036580483
        %v2570 = vmul.f32 %v2565, %v2569
        %v2571 = vadd.f32 %v2570, 0.05243302
        %v2572 = vmul.f32 %v2565, %v2571
        %v2573 = vadd.f32 %v2572, 0.18741608
        %v2574 = vmul.f32 %v2565, %v2573
        %v2575 = vadd.f32 %v2574, 1.1283791
        %v2576 = vmul.f32 %v2275, %v2575
        %v2577 = vmul.f32 %v2565, 3.8918573e-05
        %v2578 = vadd.f32 %v2577, 0.001143296
        %v2579 = vmul.f32 %v2565, %v2578
        %v2580 = vadd.f32 %v2579, 0.014752088
        %v2581 = vmul.f32 %v2565, %v2580
        %v2582 = vadd.f32 %v2581, 0.112945676
        %v2583 = vmul.f32 %v2565, %v2582
        %v2584 = vadd.f32 %v2583, 0.4994258
        %v2585 = vmul.f32 %v2565, %v2584
        %v2586 = vadd.f32 %v2585, 1.0
        %v2587 = vrcp.pop %v2586
        %v2588 = vmul.f32 %v2586, %v2587
        %v2589 = vsub.f32 1.0, %v2588
        %v2590 = vmul.f32 %v2587, %v2589
        %v2591 = vadd.f32 %v2587, %v2590
        %vm2592 = vweird.f32 %v2586
        %vm2593 = vweird.f32 %v2587
        %vm2594 = vmor %vm2592, %vm2593
        %v2595 = vsel %vm2594, %v2587, %v2591
        %v2596 = vand.u32 2147483647, %v2586
        %vm2597 = vcmp.eq.f32.partialorder %v2596, 8.507059e+37
        %v2598 = vand.u32 %v2586, 2147483648
        %v2599 = vor.u32 1.1754944e-38, %v2598
        %v2600 = vsel %vm2597, %v2599, %v2595
        %v2601 = vmul.f32 %v2576, %v2600
        %v2602 = vmin.f32 %v2601, 1.0
        %v2603 = vmax.f32 %v2602, -1.0
        %v2604 = vmul.f32 %v2276, %v2276
        %v2605 = vmin.f32 16.0, %v2604
        %v2606 = vmul.f32 %v2605, 2.1237322e-06
        %v2607 = vadd.f32 %v2606, 0.00028619796
        %v2608 = vmul.f32 %v2605, %v2607
        %v2609 = vadd.f32 %v2608, 0.0036580483
        %v2610 = vmul.f32 %v2605, %v2609
        %v2611 = vadd.f32 %v2610, 0.05243302
        %v2612 = vmul.f32 %v2605, %v2611
        %v2613 = vadd.f32 %v2612, 0.18741608
        %v2614 = vmul.f32 %v2605, %v2613
        %v2615 = vadd.f32 %v2614, 1.1283791
        %v2616 = vmul.f32 %v2276, %v2615
        %v2617 = vmul.f32 %v2605, 3.8918573e-05
        %v2618 = vadd.f32 %v2617, 0.001143296
        %v2619 = vmul.f32 %v2605, %v2618
        %v2620 = vadd.f32 %v2619, 0.014752088
        %v2621 = vmul.f32 %v2605, %v2620
        %v2622 = vadd.f32 %v2621, 0.112945676
        %v2623 = vmul.f32 %v2605, %v2622
        %v2624 = vadd.f32 %v2623, 0.4994258
        %v2625 = vmul.f32 %v2605, %v2624
        %v2626 = vadd.f32 %v2625, 1.0
        %v2627 = vrcp.pop %v2626
        %v2628 = vmul.f32 %v2626, %v2627
        %v2629 = vsub.f32 1.0, %v2628
        %v2630 = vmul.f32 %v2627, %v2629
        %v2631 = vadd.f32 %v2627, %v2630
        %vm2632 = vweird.f32 %v2626
        %vm2633 = vweird.f32 %v2627
        %vm2634 = vmor %vm2632, %vm2633
        %v2635 = vsel %vm2634, %v2627, %v2631
        %v2636 = vand.u32 2147483647, %v2626
        %vm2637 = vcmp.eq.f32.partialorder %v2636, 8.507059e+37
        %v2638 = vand.u32 %v2626, 2147483648
        %v2639 = vor.u32 1.1754944e-38, %v2638
        %v2640 = vsel %vm2637, %v2639, %v2635
        %v2641 = vmul.f32 %v2616, %v2640
        %v2642 = vmin.f32 %v2641, 1.0
        %v2643 = vmax.f32 %v2642, -1.0
        %v2644 = vmul.f32 %v2277, %v2277
        %v2645 = vmin.f32 16.0, %v2644
        %v2646 = vmul.f32 %v2645, 2.1237322e-06
        %v2647 = vadd.f32 %v2646, 0.00028619796
        %v2648 = vmul.f32 %v2645, %v2647
        %v2649 = vadd.f32 %v2648, 0.0036580483
        %v2650 = vmul.f32 %v2645, %v2649
        %v2651 = vadd.f32 %v2650, 0.05243302
        %v2652 = vmul.f32 %v2645, %v2651
        %v2653 = vadd.f32 %v2652, 0.18741608
        %v2654 = vmul.f32 %v2645, %v2653
        %v2655 = vadd.f32 %v2654, 1.1283791
        %v2656 = vmul.f32 %v2277, %v2655
        %v2657 = vmul.f32 %v2645, 3.8918573e-05
        %v2658 = vadd.f32 %v2657, 0.001143296
        %v2659 = vmul.f32 %v2645, %v2658
        %v2660 = vadd.f32 %v2659, 0.014752088
        %v2661 = vmul.f32 %v2645, %v2660
        %v2662 = vadd.f32 %v2661, 0.112945676
        %v2663 = vmul.f32 %v2645, %v2662
        %v2664 = vadd.f32 %v2663, 0.4994258
        %v2665 = vmul.f32 %v2645, %v2664
        %v2666 = vadd.f32 %v2665, 1.0
        %v2667 = vrcp.pop %v2666
        %v2668 = vmul.f32 %v2666, %v2667
        %v2669 = vsub.f32 1.0, %v2668
        %v2670 = vmul.f32 %v2667, %v2669
        %v2671 = vadd.f32 %v2667, %v2670
        %vm2672 = vweird.f32 %v2666
        %vm2673 = vweird.f32 %v2667
        %vm2674 = vmor %vm2672, %vm2673
        %v2675 = vsel %vm2674, %v2667, %v2671
        %v2676 = vand.u32 2147483647, %v2666
        %vm2677 = vcmp.eq.f32.partialorder %v2676, 8.507059e+37
        %v2678 = vand.u32 %v2666, 2147483648
        %v2679 = vor.u32 1.1754944e-38, %v2678
        %v2680 = vsel %vm2677, %v2679, %v2675
        %v2681 = vmul.f32 %v2656, %v2680
        %v2682 = vmin.f32 %v2681, 1.0
        %v2683 = vmax.f32 %v2682, -1.0
        %v2684 = vmul.f32 %v2278, %v2278
        %v2685 = vmin.f32 16.0, %v2684
        %v2686 = vmul.f32 %v2685, 2.1237322e-06
        %v2687 = vadd.f32 %v2686, 0.00028619796
        %v2688 = vmul.f32 %v2685, %v2687
        %v2689 = vadd.f32 %v2688, 0.0036580483
        %v2690 = vmul.f32 %v2685, %v2689
        %v2691 = vadd.f32 %v2690, 0.05243302
        %v2692 = vmul.f32 %v2685, %v2691
        %v2693 = vadd.f32 %v2692, 0.18741608
        %v2694 = vmul.f32 %v2685, %v2693
        %v2695 = vadd.f32 %v2694, 1.1283791
        %v2696 = vmul.f32 %v2278, %v2695
        %v2697 = vmul.f32 %v2685, 3.8918573e-05
        %v2698 = vadd.f32 %v2697, 0.001143296
        %v2699 = vmul.f32 %v2685, %v2698
        %v2700 = vadd.f32 %v2699, 0.014752088
        %v2701 = vmul.f32 %v2685, %v2700
        %v2702 = vadd.f32 %v2701, 0.112945676
        %v2703 = vmul.f32 %v2685, %v2702
        %v2704 = vadd.f32 %v2703, 0.4994258
        %v2705 = vmul.f32 %v2685, %v2704
        %v2706 = vadd.f32 %v2705, 1.0
        %v2707 = vrcp.pop %v2706
        %v2708 = vmul.f32 %v2706, %v2707
        %v2709 = vsub.f32 1.0, %v2708
        %v2710 = vmul.f32 %v2707, %v2709
        %v2711 = vadd.f32 %v2707, %v2710
        %vm2712 = vweird.f32 %v2706
        %vm2713 = vweird.f32 %v2707
        %vm2714 = vmor %vm2712, %vm2713
        %v2715 = vsel %vm2714, %v2707, %v2711
        %v2716 = vand.u32 2147483647, %v2706
        %vm2717 = vcmp.eq.f32.partialorder %v2716, 8.507059e+37
        %v2718 = vand.u32 %v2706, 2147483648
        %v2719 = vor.u32 1.1754944e-38, %v2718
        %v2720 = vsel %vm2717, %v2719, %v2715
        %v2721 = vmul.f32 %v2696, %v2720
        %v2722 = vmin.f32 %v2721, 1.0
        %v2723 = vmax.f32 %v2722, -1.0
        %v2724 = vmul.f32 %v2279, %v2279
        %v2725 = vmin.f32 16.0, %v2724
        %v2726 = vmul.f32 %v2725, 2.1237322e-06
        %v2727 = vadd.f32 %v2726, 0.00028619796
        %v2728 = vmul.f32 %v2725, %v2727
        %v2729 = vadd.f32 %v2728, 0.0036580483
        %v2730 = vmul.f32 %v2725, %v2729
        %v2731 = vadd.f32 %v2730, 0.05243302
        %v2732 = vmul.f32 %v2725, %v2731
        %v2733 = vadd.f32 %v2732, 0.18741608
        %v2734 = vmul.f32 %v2725, %v2733
        %v2735 = vadd.f32 %v2734, 1.1283791
        %v2736 = vmul.f32 %v2279, %v2735
        %v2737 = vmul.f32 %v2725, 3.8918573e-05
        %v2738 = vadd.f32 %v2737, 0.001143296
        %v2739 = vmul.f32 %v2725, %v2738
        %v2740 = vadd.f32 %v2739, 0.014752088
        %v2741 = vmul.f32 %v2725, %v2740
        %v2742 = vadd.f32 %v2741, 0.112945676
        %v2743 = vmul.f32 %v2725, %v2742
        %v2744 = vadd.f32 %v2743, 0.4994258
        %v2745 = vmul.f32 %v2725, %v2744
        %v2746 = vadd.f32 %v2745, 1.0
        %v2747 = vrcp.pop %v2746
        %v2748 = vmul.f32 %v2746, %v2747
        %v2749 = vsub.f32 1.0, %v2748
        %v2750 = vmul.f32 %v2747, %v2749
        %v2751 = vadd.f32 %v2747, %v2750
        %vm2752 = vweird.f32 %v2746
        %vm2753 = vweird.f32 %v2747
        %vm2754 = vmor %vm2752, %vm2753
        %v2755 = vsel %vm2754, %v2747, %v2751
        %v2756 = vand.u32 2147483647, %v2746
        %vm2757 = vcmp.eq.f32.partialorder %v2756, 8.507059e+37
        %v2758 = vand.u32 %v2746, 2147483648
        %v2759 = vor.u32 1.1754944e-38, %v2758
        %v2760 = vsel %vm2757, %v2759, %v2755
        %v2761 = vmul.f32 %v2736, %v2760
        %v2762 = vmin.f32 %v2761, 1.0
        %v2763 = vmax.f32 %v2762, -1.0
        %v2764 = vmul.f32 %v2280, %v2280
        %v2765 = vmin.f32 16.0, %v2764
        %v2766 = vmul.f32 %v2765, 2.1237322e-06
        %v2767 = vadd.f32 %v2766, 0.00028619796
        %v2768 = vmul.f32 %v2765, %v2767
        %v2769 = vadd.f32 %v2768, 0.0036580483
        %v2770 = vmul.f32 %v2765, %v2769
        %v2771 = vadd.f32 %v2770, 0.05243302
        %v2772 = vmul.f32 %v2765, %v2771
        %v2773 = vadd.f32 %v2772, 0.18741608
        %v2774 = vmul.f32 %v2765, %v2773
        %v2775 = vadd.f32 %v2774, 1.1283791
        %v2776 = vmul.f32 %v2280, %v2775
        %v2777 = vmul.f32 %v2765, 3.8918573e-05
        %v2778 = vadd.f32 %v2777, 0.001143296
        %v2779 = vmul.f32 %v2765, %v2778
        %v2780 = vadd.f32 %v2779, 0.014752088
        %v2781 = vmul.f32 %v2765, %v2780
        %v2782 = vadd.f32 %v2781, 0.112945676
        %v2783 = vmul.f32 %v2765, %v2782
        %v2784 = vadd.f32 %v2783, 0.4994258
        %v2785 = vmul.f32 %v2765, %v2784
        %v2786 = vadd.f32 %v2785, 1.0
        %v2787 = vrcp.pop %v2786
        %v2788 = vmul.f32 %v2786, %v2787
        %v2789 = vsub.f32 1.0, %v2788
        %v2790 = vmul.f32 %v2787, %v2789
        %v2791 = vadd.f32 %v2787, %v2790
        %vm2792 = vweird.f32 %v2786
        %vm2793 = vweird.f32 %v2787
        %vm2794 = vmor %vm2792, %vm2793
        %v2795 = vsel %vm2794, %v2787, %v2791
        %v2796 = vand.u32 2147483647, %v2786
        %vm2797 = vcmp.eq.f32.partialorder %v2796, 8.507059e+37
        %v2798 = vand.u32 %v2786, 2147483648
        %v2799 = vor.u32 1.1754944e-38, %v2798
        %v2800 = vsel %vm2797, %v2799, %v2795
        %v2801 = vmul.f32 %v2776, %v2800
        %v2802 = vmin.f32 %v2801, 1.0
        %v2803 = vmax.f32 %v2802, -1.0
        %v2804 = vmul.f32 %v2281, %v2281
        %v2805 = vmin.f32 16.0, %v2804
        %v2806 = vmul.f32 %v2805, 2.1237322e-06
        %v2807 = vadd.f32 %v2806, 0.00028619796
        %v2808 = vmul.f32 %v2805, %v2807
        %v2809 = vadd.f32 %v2808, 0.0036580483
        %v2810 = vmul.f32 %v2805, %v2809
        %v2811 = vadd.f32 %v2810, 0.05243302
        %v2812 = vmul.f32 %v2805, %v2811
        %v2813 = vadd.f32 %v2812, 0.18741608
        %v2814 = vmul.f32 %v2805, %v2813
        %v2815 = vadd.f32 %v2814, 1.1283791
        %v2816 = vmul.f32 %v2281, %v2815
        %v2817 = vmul.f32 %v2805, 3.8918573e-05
        %v2818 = vadd.f32 %v2817, 0.001143296
        %v2819 = vmul.f32 %v2805, %v2818
        %v2820 = vadd.f32 %v2819, 0.014752088
        %v2821 = vmul.f32 %v2805, %v2820
        %v2822 = vadd.f32 %v2821, 0.112945676
        %v2823 = vmul.f32 %v2805, %v2822
        %v2824 = vadd.f32 %v2823, 0.4994258
        %v2825 = vmul.f32 %v2805, %v2824
        %v2826 = vadd.f32 %v2825, 1.0
        %v2827 = vrcp.pop %v2826
        %v2828 = vmul.f32 %v2826, %v2827
        %v2829 = vsub.f32 1.0, %v2828
        %v2830 = vmul.f32 %v2827, %v2829
        %v2831 = vadd.f32 %v2827, %v2830
        %vm2832 = vweird.f32 %v2826
        %vm2833 = vweird.f32 %v2827
        %vm2834 = vmor %vm2832, %vm2833
        %v2835 = vsel %vm2834, %v2827, %v2831
        %v2836 = vand.u32 2147483647, %v2826
        %vm2837 = vcmp.eq.f32.partialorder %v2836, 8.507059e+37
        %v2838 = vand.u32 %v2826, 2147483648
        %v2839 = vor.u32 1.1754944e-38, %v2838
        %v2840 = vsel %vm2837, %v2839, %v2835
        %v2841 = vmul.f32 %v2816, %v2840
        %v2842 = vmin.f32 %v2841, 1.0
        %v2843 = vmax.f32 %v2842, -1.0
        %v2844 = vmul.f32 %v2282, %v2282
        %v2845 = vmin.f32 16.0, %v2844
        %v2846 = vmul.f32 %v2845, 2.1237322e-06
        %v2847 = vadd.f32 %v2846, 0.00028619796
        %v2848 = vmul.f32 %v2845, %v2847
        %v2849 = vadd.f32 %v2848, 0.0036580483
        %v2850 = vmul.f32 %v2845, %v2849
        %v2851 = vadd.f32 %v2850, 0.05243302
        %v2852 = vmul.f32 %v2845, %v2851
        %v2853 = vadd.f32 %v2852, 0.18741608
        %v2854 = vmul.f32 %v2845, %v2853
        %v2855 = vadd.f32 %v2854, 1.1283791
        %v2856 = vmul.f32 %v2282, %v2855
        %v2857 = vmul.f32 %v2845, 3.8918573e-05
        %v2858 = vadd.f32 %v2857, 0.001143296
        %v2859 = vmul.f32 %v2845, %v2858
        %v2860 = vadd.f32 %v2859, 0.014752088
        %v2861 = vmul.f32 %v2845, %v2860
        %v2862 = vadd.f32 %v2861, 0.112945676
        %v2863 = vmul.f32 %v2845, %v2862
        %v2864 = vadd.f32 %v2863, 0.4994258
        %v2865 = vmul.f32 %v2845, %v2864
        %v2866 = vadd.f32 %v2865, 1.0
        %v2867 = vrcp.pop %v2866
        %v2868 = vmul.f32 %v2866, %v2867
        %v2869 = vsub.f32 1.0, %v2868
        %v2870 = vmul.f32 %v2867, %v2869
        %v2871 = vadd.f32 %v2867, %v2870
        %vm2872 = vweird.f32 %v2866
        %vm2873 = vweird.f32 %v2867
        %vm2874 = vmor %vm2872, %vm2873
        %v2875 = vsel %vm2874, %v2867, %v2871
        %v2876 = vand.u32 2147483647, %v2866
        %vm2877 = vcmp.eq.f32.partialorder %v2876, 8.507059e+37
        %v2878 = vand.u32 %v2866, 2147483648
        %v2879 = vor.u32 1.1754944e-38, %v2878
        %v2880 = vsel %vm2877, %v2879, %v2875
        %v2881 = vmul.f32 %v2856, %v2880
        %v2882 = vmin.f32 %v2881, 1.0
        %v2883 = vmax.f32 %v2882, -1.0
        %v2884 = vmul.f32 %v2283, %v2283
        %v2885 = vmin.f32 16.0, %v2884
        %v2886 = vmul.f32 %v2885, 2.1237322e-06
        %v2887 = vadd.f32 %v2886, 0.00028619796
        %v2888 = vmul.f32 %v2885, %v2887
        %v2889 = vadd.f32 %v2888, 0.0036580483
        %v2890 = vmul.f32 %v2885, %v2889
        %v2891 = vadd.f32 %v2890, 0.05243302
        %v2892 = vmul.f32 %v2885, %v2891
        %v2893 = vadd.f32 %v2892, 0.18741608
        %v2894 = vmul.f32 %v2885, %v2893
        %v2895 = vadd.f32 %v2894, 1.1283791
        %v2896 = vmul.f32 %v2283, %v2895
        %v2897 = vmul.f32 %v2885, 3.8918573e-05
        %v2898 = vadd.f32 %v2897, 0.001143296
        %v2899 = vmul.f32 %v2885, %v2898
        %v2900 = vadd.f32 %v2899, 0.014752088
        %v2901 = vmul.f32 %v2885, %v2900
        %v2902 = vadd.f32 %v2901, 0.112945676
        %v2903 = vmul.f32 %v2885, %v2902
        %v2904 = vadd.f32 %v2903, 0.4994258
        %v2905 = vmul.f32 %v2885, %v2904
        %v2906 = vadd.f32 %v2905, 1.0
        %v2907 = vrcp.pop %v2906
        %v2908 = vmul.f32 %v2906, %v2907
        %v2909 = vsub.f32 1.0, %v2908
        %v2910 = vmul.f32 %v2907, %v2909
        %v2911 = vadd.f32 %v2907, %v2910
        %vm2912 = vweird.f32 %v2906
        %vm2913 = vweird.f32 %v2907
        %vm2914 = vmor %vm2912, %vm2913
        %v2915 = vsel %vm2914, %v2907, %v2911
        %v2916 = vand.u32 2147483647, %v2906
        %vm2917 = vcmp.eq.f32.partialorder %v2916, 8.507059e+37
        %v2918 = vand.u32 %v2906, 2147483648
        %v2919 = vor.u32 1.1754944e-38, %v2918
        %v2920 = vsel %vm2917, %v2919, %v2915
        %v2921 = vmul.f32 %v2896, %v2920
        %v2922 = vmin.f32 %v2921, 1.0
        %v2923 = vmax.f32 %v2922, -1.0
        %v2924 = vadd.f32 %v2323, 1.0
        %v2925 = vadd.f32 %v2363, 1.0
        %v2926 = vadd.f32 %v2403, 1.0
        %v2927 = vadd.f32 %v2443, 1.0
        %v2928 = vadd.f32 %v2483, 1.0
        %v2929 = vadd.f32 %v2523, 1.0
        %v2930 = vadd.f32 %v2563, 1.0
        %v2931 = vadd.f32 %v2603, 1.0
        %v2932 = vadd.f32 %v2643, 1.0
        %v2933 = vadd.f32 %v2683, 1.0
        %v2934 = vadd.f32 %v2723, 1.0
        %v2935 = vadd.f32 %v2763, 1.0
        %v2936 = vadd.f32 %v2803, 1.0
        %v2937 = vadd.f32 %v2843, 1.0
        %v2938 = vadd.f32 %v2883, 1.0
        %v2939 = vadd.f32 %v2923, 1.0
        %v2940 = vmul.f32 %v2252, %v2924
        %v2941 = vmul.f32 %v2253, %v2925
        %v2942 = vmul.f32 %v2254, %v2926
        %v2943 = vmul.f32 %v2255, %v2927
        %v2944 = vmul.f32 %v2256, %v2928
        %v2945 = vmul.f32 %v2257, %v2929
        %v2946 = vmul.f32 %v2258, %v2930
        %v2947 = vmul.f32 %v2259, %v2931
        %v2948 = vmul.f32 %v2260, %v2932
        %v2949 = vmul.f32 %v2261, %v2933
        %v2950 = vmul.f32 %v2262, %v2934
        %v2951 = vmul.f32 %v2263, %v2935
        %v2952 = vmul.f32 %v2264, %v2936
        %v2953 = vmul.f32 %v2265, %v2937
        %v2954 = vmul.f32 %v2266, %v2938
        %v2955 = vmul.f32 %v2267, %v2939
        %v2956 = vmax.f32 %v2236, %v2940
        %v2957 = vmax.f32 %v2237, %v2941
        %v2958 = vmax.f32 %v2238, %v2942
        %v2959 = vmax.f32 %v2239, %v2943
        %v2960 = vmax.f32 %v2240, %v2944
        %v2961 = vmax.f32 %v2241, %v2945
        %v2962 = vmax.f32 %v2242, %v2946
        %v2963 = vmax.f32 %v2243, %v2947
        %v2964 = vmax.f32 %v2244, %v2948
        %v2965 = vmax.f32 %v2245, %v2949
        %v2966 = vmax.f32 %v2246, %v2950
        %v2967 = vmax.f32 %v2247, %v2951
        %v2968 = vmax.f32 %v2248, %v2952
        %v2969 = vmax.f32 %v2249, %v2953
        %v2970 = vmax.f32 %v2250, %v2954
        %v2971 = vmax.f32 %v2251, %v2955
        %v2988 = vrot.slane %v2957, 7
        %v2989 = vsel %vm756, %v2988, %v2956
        %v2990 = vrot.slane %v2958, 6
        %v2991 = vsel %vm759, %v2990, %v2989
        %v2992 = vrot.slane %v2959, 5
        %v2993 = vsel %vm762, %v2992, %v2991
        %v2994 = vrot.slane %v2960, 4
        %v2995 = vsel %vm765, %v2994, %v2993
        %v2996 = vrot.slane %v2961, 3
        %v2997 = vsel %vm768, %v2996, %v2995
        %v2998 = vrot.slane %v2962, 2
        %v2999 = vsel %vm771, %v2998, %v2997
        %v3000 = vrot.slane %v2963, 1
        %v3001 = vsel %vm774, %v3000, %v2999
        %v3002 = vrot.slane %v2965, 7
        %v3003 = vsel %vm756, %v3002, %v2964
        %v3004 = vrot.slane %v2966, 6
        %v3005 = vsel %vm759, %v3004, %v3003
        %v3006 = vrot.slane %v2967, 5
        %v3007 = vsel %vm762, %v3006, %v3005
        %v3008 = vrot.slane %v2968, 4
        %v3009 = vsel %vm765, %v3008, %v3007
        %v3010 = vrot.slane %v2969, 3
        %v3011 = vsel %vm768, %v3010, %v3009
        %v3012 = vrot.slane %v2970, 2
        %v3013 = vsel %vm771, %v3012, %v3011
        %v3014 = vrot.slane %v2971, 1
        %v3015 = vsel %vm774, %v3014, %v3013
        %vm3018 = vcmask 523264
        %3019 = vst.msk [vmem:[%s234] sm:$0xff] %vm3018, %v3001
        %3020 = vst.msk [vmem:[%s234 + $0x8] sm:$0xff] %vm3018, %v3015
        %s3021 = sand.u32 %s142, 1
        %s3022 = scalar_lea.sflag [#allocation3], %s3021
        %s3023 = sand.u32 %s142, 1
        %s3024 = smul.addr %s3023, 16
        %s3025 = scalar_lea.vmem [#allocation2], %s3024
        // Predicated region
        $region41: #{tpu_custom_call.1} parent=39 // pred_check
          %p3026 = pneg %p152
        $region42: #{tpu_custom_call.1} parent=39 // pred_check_branch
          %3028 = sbr.rel (%p3026) target = $region44
        $region43: #{tpu_custom_call.1} parent=39 // pred_region
          %s3029 = smul.u32 2, %s19
          %3031 = vsyncadd %s3022, 0
          %s3032 = smul.addr %s3029, 8
          %s3033 = scalar_lea.hbm %s5, %s3032
          %s3034 = sshll.u32 %s3025, 4
          %s3035 = int_to_ptr.vmem [resolvable:$true] %s3034
          %s3036 = sshll.u32 %s3033, 4
          %s3037 = int_to_ptr.hbm [resolvable:$true] %s3036
          %3042 = dma.vmem_to_hbm [thread:$0]  %s3035, 256, %s3037, %s3022, 128, 128, 8
        $region44: #{tpu_custom_call.1} parent=39 // pred_fallthru
          _
      $region40: #{tpu_custom_call.1} parent=5 // pred_fallthru
        _
      %p3043 = scmp.le.s32.totalorder 2, %s14
      // Predicated region
      $region45: #{tpu_custom_call.1} parent=5 // pred_check
        %p3044 = pneg %p3043
      $region46: #{tpu_custom_call.1} parent=5 // pred_check_branch
        %3046 = sbr.rel (%p3044) target = $region48
      $region47: #{tpu_custom_call.1} parent=5 // pred_region
        %s3047 = ssub.s32 %s14, 2
        // Predicated region
        $region49: #{tpu_custom_call.1} parent=47 // pred_check
          %p3048 = pneg %p158
        $region50: #{tpu_custom_call.1} parent=47 // pred_check_branch
          %3050 = sbr.rel (%p3048) target = $region52
        $region51: #{tpu_custom_call.1} parent=47 // pred_region
          %s3051 = sand.u32 %s143, 1
          %s3052 = scalar_lea.sflag [#allocation3], %s3051
          %s3053 = sand.u32 %s143, 1
          %s3054 = smul.addr %s3053, 16
          %s3055 = scalar_lea.vmem [#allocation2], %s3054
          %3057 = dma.done %s3052, 256
        $region52: #{tpu_custom_call.1} parent=47 // pred_fallthru
          _
      $region48: #{tpu_custom_call.1} parent=5 // pred_fallthru
        _
    $region6: #{tpu_custom_call.1} parent=1 // loop_footer
      %s18 = sadd.s32 1, %s14
    $region7: #{tpu_custom_call.1} parent=1 // loop_footer_branch
      %13 = sbr.rel target = $region3
    $region8: #{tpu_custom_call.1} parent=1 // loop_exit
      _
    %3058 = vsyncpa [#allocation3], 1
    %s3059 = scalar_lea.sflag [#allocation3], 1
    %3060 = vsyncpa %s3059, 1

</llo_original>
